<compile_context>
chip_gen: v7x
topology: tpu7x:2x2x1
jax: 0.10.0
libtpu: 0.0.40
codegen_flags: <defaults>
</compile_context>

<pallas_src>
import math
from functools import partial

import jax
import jax.numpy as jnp
from jax import lax
from jax.experimental import pallas as pl
from jax.experimental.pallas import tpu as pltpu


def mha_kernel(x_ref, wqkv_ref, bqkv_ref, wo_ref, bo_ref, o_ref, *,
               num_heads, kq_dimension, out_dimension, masked):
    # x_ref:    (1, S, Din)
    # wqkv_ref: (Din, H*(2*Dk+Dv))   bqkv_ref: (1, H*(2*Dk+Dv))
    # wo_ref:   (H*Dv, Dv)           bo_ref:   (1, Dv)
    # o_ref:    (1, S, Dv)
    H, Dk, Dv = num_heads, kq_dimension, out_dimension
    x = x_ref[0]                                        # (S, Din)
    S = x.shape[0]
    inv_scale = 1.0 / math.sqrt(Dk)

    # One fused, lane-dense projection matmul for all heads' Q, K and V.
    qkv = (jnp.dot(x, wqkv_ref[...], preferred_element_type=jnp.float32)
           + bqkv_ref[...])                             # (S, H*(2Dk+Dv)) f32

    # Causal mask built once (hoisted out of the head loop).
    if masked:
        row = lax.broadcasted_iota(jnp.int32, (S, S), 0)
        col = lax.broadcasted_iota(jnp.int32, (S, S), 1)
        causal_mask = col > row
        neg_big = jnp.float32(-1e30)   # finite: avoids (-inf) - (-inf) NaN risk

    wo = wo_ref[...]                                    # (H*Dv, Dv)
    q_off, k_off, v_off = 0, H * Dk, 2 * H * Dk

    # Per-head SDPA; each head's output is accumulated directly into the output
    # projection (acc += head_h @ Wo[h]) — no concatenate, no wide live set.
    acc = jnp.zeros((S, Dv), jnp.float32)
    for h in range(H):
        q_h = qkv[:, q_off + h * Dk: q_off + (h + 1) * Dk]   # (S, Dk)
        k_h = qkv[:, k_off + h * Dk: k_off + (h + 1) * Dk]   # (S, Dk)
        v_h = qkv[:, v_off + h * Dv: v_off + (h + 1) * Dv]   # (S, Dv)

        # q @ k^T without an explicit transpose: contract last dims of both.
        s = lax.dot_general(q_h, k_h, (((1,), (1,)), ((), ())),
                            preferred_element_type=jnp.float32) * inv_scale
        if masked:
            s = jnp.where(causal_mask, neg_big, s)

        # Numerically-stable softmax (f32); reciprocal goes to the EUP slot.
        s = s - jnp.max(s, axis=-1, keepdims=True)
        p = jnp.exp(s)
        p = p * pl.reciprocal(jnp.sum(p, axis=-1, keepdims=True), approx=True)

        z_h = jnp.dot(p, v_h, preferred_element_type=jnp.float32)       # (S, Dv)
        acc = acc + jnp.dot(z_h, wo[h * Dv:(h + 1) * Dv, :],
                            preferred_element_type=jnp.float32)

    o_ref[0] = (acc + bo_ref[...]).astype(o_ref.dtype)


def _replicated_spec(shape):
    """Whole-array block, same block for every grid step (weights/biases)."""
    ndim = len(shape)
    return pl.BlockSpec(shape, lambda b, _n=ndim: (0,) * _n)


def mha_forward(x, params, *, num_heads, kq_dimension, out_dimension, masked=False):
    B, S, Din = x.shape
    wq, bq, wk, bk, wv, bv, wo, bo = params
    H, Dk, Dv = num_heads, kq_dimension, out_dimension

    # Pure layout plumbing (outside the kernel): pack per-head Q/K/V weights into a
    # single (Din, H*(2*Dk+Dv)) matrix so the kernel does one wide MXU matmul.
    wq_f = jnp.transpose(wq, (1, 0, 2)).reshape(Din, H * Dk)
    wk_f = jnp.transpose(wk, (1, 0, 2)).reshape(Din, H * Dk)
    wv_f = jnp.transpose(wv, (1, 0, 2)).reshape(Din, H * Dv)
    w_qkv = jnp.concatenate([wq_f, wk_f, wv_f], axis=1)          # (Din, H*(2Dk+Dv))
    b_qkv = jnp.concatenate([bq.reshape(-1), bk.reshape(-1),
                             bv.reshape(-1)])[None, :]           # (1, H*(2Dk+Dv))
    bo2 = bo.reshape(1, Dv)
    n_qkv = w_qkv.shape[1]

    kernel = partial(mha_kernel, num_heads=H, kq_dimension=Dk,
                     out_dimension=Dv, masked=masked)

    flops = B * (2 * S * Din * n_qkv          # fused QKV projection
                 + H * 2 * S * S * Dk         # QK^T
                 + H * 2 * S * S * Dv         # attn @ V
                 + 2 * S * (H * Dv) * Dv)     # output projection (accumulated)
    bytes_accessed = 4 * (x.size + w_qkv.size + b_qkv.size + wo.size + bo2.size
                          + B * S * Dv)
    cost = pl.CostEstimate(flops=flops, transcendentals=B * H * S * S,
                           bytes_accessed=bytes_accessed)

    return pl.pallas_call(
        kernel,
        out_shape=jax.ShapeDtypeStruct((B, S, Dv), x.dtype),
        grid_spec=pltpu.PrefetchScalarGridSpec(
            num_scalar_prefetch=0,
            grid=(B,),
            in_specs=[
                pl.BlockSpec((1, S, Din), lambda b: (b, 0, 0)),   # x: one batch row
                _replicated_spec(w_qkv.shape),
                _replicated_spec(b_qkv.shape),
                _replicated_spec(wo.shape),
                _replicated_spec(bo2.shape),
            ],
            out_specs=pl.BlockSpec((1, S, Dv), lambda b: (b, 0, 0)),
        ),
        compiler_params=pltpu.CompilerParams(
            dimension_semantics=("parallel",),   # batch elems independent (v7x: 2 TCs)
            vmem_limit_bytes=32 * 1024 * 1024,
        ),
        cost_estimate=cost,
    )(x, w_qkv, b_qkv, wo, bo2)


def init_mha_params(key, in_dimension, out_dimension, kq_dimension, num_heads):
    """Deterministic init mimicking torch Linear's uniform(-1/sqrt(fan_in), ...)."""
    ks = jax.random.split(key, 8)

    def u(k, shape, fan_in):
        bound = 1.0 / math.sqrt(fan_in)
        return jax.random.uniform(k, shape, jnp.float32, -bound, bound)

    wq = u(ks[0], (num_heads, in_dimension, kq_dimension), in_dimension)
    bq = u(ks[1], (num_heads, kq_dimension), in_dimension)
    wk = u(ks[2], (num_heads, in_dimension, kq_dimension), in_dimension)
    bk = u(ks[3], (num_heads, kq_dimension), in_dimension)
    wv = u(ks[4], (num_heads, in_dimension, out_dimension), in_dimension)
    bv = u(ks[5], (num_heads, out_dimension), in_dimension)
    wo = u(ks[6], (num_heads * out_dimension, out_dimension), num_heads * out_dimension)
    bo = u(ks[7], (out_dimension,), num_heads * out_dimension)
    return (wq, bq, wk, bk, wv, bv, wo, bo)


def mha_reference(x, params, *, kq_dimension, masked=False):
    """Plain-JAX reference matching the PyTorch forward."""
    wq, bq, wk, bk, wv, bv, wo, bo = params
    q = jnp.einsum('bsi,hik->bhsk', x, wq) + bq[None, :, None, :]
    k = jnp.einsum('bsi,hik->bhsk', x, wk) + bk[None, :, None, :]
    v = jnp.einsum('bsi,hiv->bhsv', x, wv) + bv[None, :, None, :]
    attn = jnp.einsum('bhqk,bhsk->bhqs', q, k) / math.sqrt(kq_dimension)
    if masked:
        S = x.shape[1]
        mask = jnp.triu(jnp.ones((S, S), bool), k=1)
        attn = jnp.where(mask, -jnp.inf, attn)
    attn = jax.nn.softmax(attn, axis=-1)
    z = jnp.einsum('bhqs,bhsv->bhqv', attn, v)                       # (B,H,S,Dv)
    y = jnp.transpose(z, (0, 2, 1, 3)).reshape(x.shape[0], x.shape[1], -1)
    return y @ wo + bo


if __name__ == "__main__":
    B, S = 2, 8
    in_dimension, out_dimension, kq_dimension, num_heads = 32, 16, 16, 8

    key = jax.random.PRNGKey(0)
    kx, kp = jax.random.split(key)
    x = jax.random.normal(kx, (B, S, in_dimension), jnp.float32)
    params = init_mha_params(kp, in_dimension, out_dimension, kq_dimension, num_heads)

    for masked in (False, True):
        out = mha_forward(x, params, num_heads=num_heads, kq_dimension=kq_dimension,
                          out_dimension=out_dimension, masked=masked)
        out = jax.block_until_ready(out)
        ref = mha_reference(x, params, kq_dimension=kq_dimension, masked=masked)
        assert out.shape == (B, S, out_dimension)
        max_err = jnp.max(jnp.abs(out - ref))
        # tolerance slightly looser than 1e-4 because of pl.reciprocal(approx=True)
        assert jnp.allclose(out, ref, atol=5e-3, rtol=5e-3), \
            f"masked={masked} max err {max_err}"

    print("KERNEL_OK")
</pallas_src>

<mosaic_0001>
module attributes {stable_mosaic.version = 11 : i64} {
  func.func @mha_kernel(%arg0: i32, %arg1: memref<1x8x32xf32, #tpu.memory_space<vmem>>, %arg2: memref<32x384xf32, #tpu.memory_space<vmem>>, %arg3: memref<1x384xf32, #tpu.memory_space<vmem>>, %arg4: memref<128x16xf32, #tpu.memory_space<vmem>>, %arg5: memref<1x16xf32, #tpu.memory_space<vmem>>, %arg6: memref<1x8x16xf32, #tpu.memory_space<vmem>>) attributes {dimension_semantics = [#tpu.dimension_semantics<parallel>], iteration_bounds = array<i64: 2>, scalar_prefetch = 0 : i64, scratch_operands = 0 : i64, tpu.core_type = #tpu.core_type<tc>, window_params = [{transform_indices = @transform_0, window_bounds = array<i64: 1, 8, 32>}, {pipeline_mode = #tpu.pipeline_mode<synchronous>, transform_indices = @transform_1, window_bounds = array<i64: 32, 384>}, {pipeline_mode = #tpu.pipeline_mode<synchronous>, transform_indices = @transform_2, window_bounds = array<i64: 1, 384>}, {pipeline_mode = #tpu.pipeline_mode<synchronous>, transform_indices = @transform_3, window_bounds = array<i64: 128, 16>}, {pipeline_mode = #tpu.pipeline_mode<synchronous>, transform_indices = @transform_4, window_bounds = array<i64: 1, 16>}, {transform_indices = @transform_5, window_bounds = array<i64: 1, 8, 16>}]} {
    %c0 = arith.constant 0 : index
    %c0_0 = arith.constant 0 : index
    %c0_1 = arith.constant 0 : index
    %0 = vector.load %arg1[%c0, %c0_0, %c0_1] : memref<1x8x32xf32, #tpu.memory_space<vmem>>, vector<1x8x32xf32>
    %1 = vector.shape_cast %0 : vector<1x8x32xf32> to vector<8x32xf32>
    %c0_2 = arith.constant 0 : index
    %c0_3 = arith.constant 0 : index
    %2 = vector.load %arg2[%c0_2, %c0_3] : memref<32x384xf32, #tpu.memory_space<vmem>>, vector<32x384xf32>
    %cst = arith.constant dense<0.000000e+00> : vector<8x384xf32>
    %3 = tpu.matmul %1, %2, %cst {dimension_numbers = #tpu.dot_dimension_numbers<[1], [0], [0], [1], [0, 0, 1, 1], [], []>} : vector<8x32xf32>, vector<32x384xf32>, vector<8x384xf32> -> vector<8x384xf32>
    %c0_4 = arith.constant 0 : index
    %c0_5 = arith.constant 0 : index
    %4 = vector.load %arg3[%c0_4, %c0_5] : memref<1x384xf32, #tpu.memory_space<vmem>>, vector<1x384xf32>
    %5 = vector.broadcast %4 : vector<1x384xf32> to vector<8x384xf32>
    %6 = arith.addf %3, %5 : vector<8x384xf32>
    %c0_6 = arith.constant 0 : index
    %c0_7 = arith.constant 0 : index
    %7 = vector.load %arg4[%c0_6, %c0_7] : memref<128x16xf32, #tpu.memory_space<vmem>>, vector<128x16xf32>
    %cst_8 = arith.constant 0.000000e+00 : f32
    %8 = vector.broadcast %cst_8 : f32 to vector<8x16xf32>
    %9 = vector.extract_strided_slice %6 {offsets = [0, 0], sizes = [8, 16], strides = [1, 1]} : vector<8x384xf32> to vector<8x16xf32>
    %10 = vector.extract_strided_slice %6 {offsets = [0, 128], sizes = [8, 16], strides = [1, 1]} : vector<8x384xf32> to vector<8x16xf32>
    %11 = vector.extract_strided_slice %6 {offsets = [0, 256], sizes = [8, 16], strides = [1, 1]} : vector<8x384xf32> to vector<8x16xf32>
    %cst_9 = arith.constant dense<0.000000e+00> : vector<8x8xf32>
    %12 = tpu.matmul %9, %10, %cst_9 {dimension_numbers = #tpu.dot_dimension_numbers<[1], [1], [0], [0], [0, 0, 1, 0], [], []>} : vector<8x16xf32>, vector<8x16xf32>, vector<8x8xf32> -> vector<8x8xf32>
    %cst_10 = arith.constant 2.500000e-01 : f32
    %13 = vector.broadcast %cst_10 : f32 to vector<8x8xf32>
    %14 = arith.mulf %12, %13 : vector<8x8xf32>
    %cst_11 = arith.constant dense<0xFF800000> : vector<8xf32>
    %15 = vector.multi_reduction <maximumf>, %14, %cst_11 [1] : vector<8x8xf32> to vector<8xf32>
    %16 = vector.shape_cast %15 : vector<8xf32> to vector<8x1xf32>
    %17 = vector.broadcast %16 : vector<8x1xf32> to vector<8x8xf32>
    %18 = arith.subf %14, %17 : vector<8x8xf32>
    %19 = math.exp %18 : vector<8x8xf32>
    %cst_12 = arith.constant dense<0.000000e+00> : vector<8xf32>
    %20 = vector.multi_reduction <add>, %19, %cst_12 [1] : vector<8x8xf32> to vector<8xf32>
    %21 = vector.shape_cast %20 : vector<8xf32> to vector<8x1xf32>
    %22 = tpu.reciprocal %21 {approx = true} : vector<8x1xf32> -> vector<8x1xf32>
    %23 = vector.broadcast %22 : vector<8x1xf32> to vector<8x8xf32>
    %24 = arith.mulf %19, %23 : vector<8x8xf32>
    %cst_13 = arith.constant dense<0.000000e+00> : vector<8x16xf32>
    %25 = tpu.matmul %24, %11, %cst_13 {dimension_numbers = #tpu.dot_dimension_numbers<[1], [0], [0], [1], [0, 0, 1, 1], [], []>} : vector<8x8xf32>, vector<8x16xf32>, vector<8x16xf32> -> vector<8x16xf32>
    %26 = vector.extract_strided_slice %7 {offsets = [0, 0], sizes = [16, 16], strides = [1, 1]} : vector<128x16xf32> to vector<16x16xf32>
    %cst_14 = arith.constant dense<0.000000e+00> : vector<8x16xf32>
    %27 = tpu.matmul %25, %26, %cst_14 {dimension_numbers = #tpu.dot_dimension_numbers<[1], [0], [0], [1], [0, 0, 1, 1], [], []>} : vector<8x16xf32>, vector<16x16xf32>, vector<8x16xf32> -> vector<8x16xf32>
    %28 = arith.addf %8, %27 : vector<8x16xf32>
    %29 = vector.extract_strided_slice %6 {offsets = [0, 16], sizes = [8, 16], strides = [1, 1]} : vector<8x384xf32> to vector<8x16xf32>
    %30 = vector.extract_strided_slice %6 {offsets = [0, 144], sizes = [8, 16], strides = [1, 1]} : vector<8x384xf32> to vector<8x16xf32>
    %31 = vector.extract_strided_slice %6 {offsets = [0, 272], sizes = [8, 16], strides = [1, 1]} : vector<8x384xf32> to vector<8x16xf32>
    %cst_15 = arith.constant dense<0.000000e+00> : vector<8x8xf32>
    %32 = tpu.matmul %29, %30, %cst_15 {dimension_numbers = #tpu.dot_dimension_numbers<[1], [1], [0], [0], [0, 0, 1, 0], [], []>} : vector<8x16xf32>, vector<8x16xf32>, vector<8x8xf32> -> vector<8x8xf32>
    %cst_16 = arith.constant 2.500000e-01 : f32
    %33 = vector.broadcast %cst_16 : f32 to vector<8x8xf32>
    %34 = arith.mulf %32, %33 : vector<8x8xf32>
    %cst_17 = arith.constant dense<0xFF800000> : vector<8xf32>
    %35 = vector.multi_reduction <maximumf>, %34, %cst_17 [1] : vector<8x8xf32> to vector<8xf32>
    %36 = vector.shape_cast %35 : vector<8xf32> to vector<8x1xf32>
    %37 = vector.broadcast %36 : vector<8x1xf32> to vector<8x8xf32>
    %38 = arith.subf %34, %37 : vector<8x8xf32>
    %39 = math.exp %38 : vector<8x8xf32>
    %cst_18 = arith.constant dense<0.000000e+00> : vector<8xf32>
    %40 = vector.multi_reduction <add>, %39, %cst_18 [1] : vector<8x8xf32> to vector<8xf32>
    %41 = vector.shape_cast %40 : vector<8xf32> to vector<8x1xf32>
    %42 = tpu.reciprocal %41 {approx = true} : vector<8x1xf32> -> vector<8x1xf32>
    %43 = vector.broadcast %42 : vector<8x1xf32> to vector<8x8xf32>
    %44 = arith.mulf %39, %43 : vector<8x8xf32>
    %cst_19 = arith.constant dense<0.000000e+00> : vector<8x16xf32>
    %45 = tpu.matmul %44, %31, %cst_19 {dimension_numbers = #tpu.dot_dimension_numbers<[1], [0], [0], [1], [0, 0, 1, 1], [], []>} : vector<8x8xf32>, vector<8x16xf32>, vector<8x16xf32> -> vector<8x16xf32>
    %46 = vector.extract_strided_slice %7 {offsets = [16, 0], sizes = [16, 16], strides = [1, 1]} : vector<128x16xf32> to vector<16x16xf32>
    %cst_20 = arith.constant dense<0.000000e+00> : vector<8x16xf32>
    %47 = tpu.matmul %45, %46, %cst_20 {dimension_numbers = #tpu.dot_dimension_numbers<[1], [0], [0], [1], [0, 0, 1, 1], [], []>} : vector<8x16xf32>, vector<16x16xf32>, vector<8x16xf32> -> vector<8x16xf32>
    %48 = arith.addf %28, %47 : vector<8x16xf32>
    %49 = vector.extract_strided_slice %6 {offsets = [0, 32], sizes = [8, 16], strides = [1, 1]} : vector<8x384xf32> to vector<8x16xf32>
    %50 = vector.extract_strided_slice %6 {offsets = [0, 160], sizes = [8, 16], strides = [1, 1]} : vector<8x384xf32> to vector<8x16xf32>
    %51 = vector.extract_strided_slice %6 {offsets = [0, 288], sizes = [8, 16], strides = [1, 1]} : vector<8x384xf32> to vector<8x16xf32>
    %cst_21 = arith.constant dense<0.000000e+00> : vector<8x8xf32>
    %52 = tpu.matmul %49, %50, %cst_21 {dimension_numbers = #tpu.dot_dimension_numbers<[1], [1], [0], [0], [0, 0, 1, 0], [], []>} : vector<8x16xf32>, vector<8x16xf32>, vector<8x8xf32> -> vector<8x8xf32>
    %cst_22 = arith.constant 2.500000e-01 : f32
    %53 = vector.broadcast %cst_22 : f32 to vector<8x8xf32>
    %54 = arith.mulf %52, %53 : vector<8x8xf32>
    %cst_23 = arith.constant dense<0xFF800000> : vector<8xf32>
    %55 = vector.multi_reduction <maximumf>, %54, %cst_23 [1] : vector<8x8xf32> to vector<8xf32>
    %56 = vector.shape_cast %55 : vector<8xf32> to vector<8x1xf32>
    %57 = vector.broadcast %56 : vector<8x1xf32> to vector<8x8xf32>
    %58 = arith.subf %54, %57 : vector<8x8xf32>
    %59 = math.exp %58 : vector<8x8xf32>
    %cst_24 = arith.constant dense<0.000000e+00> : vector<8xf32>
    %60 = vector.multi_reduction <add>, %59, %cst_24 [1] : vector<8x8xf32> to vector<8xf32>
    %61 = vector.shape_cast %60 : vector<8xf32> to vector<8x1xf32>
    %62 = tpu.reciprocal %61 {approx = true} : vector<8x1xf32> -> vector<8x1xf32>
    %63 = vector.broadcast %62 : vector<8x1xf32> to vector<8x8xf32>
    %64 = arith.mulf %59, %63 : vector<8x8xf32>
    %cst_25 = arith.constant dense<0.000000e+00> : vector<8x16xf32>
    %65 = tpu.matmul %64, %51, %cst_25 {dimension_numbers = #tpu.dot_dimension_numbers<[1], [0], [0], [1], [0, 0, 1, 1], [], []>} : vector<8x8xf32>, vector<8x16xf32>, vector<8x16xf32> -> vector<8x16xf32>
    %66 = vector.extract_strided_slice %7 {offsets = [32, 0], sizes = [16, 16], strides = [1, 1]} : vector<128x16xf32> to vector<16x16xf32>
    %cst_26 = arith.constant dense<0.000000e+00> : vector<8x16xf32>
    %67 = tpu.matmul %65, %66, %cst_26 {dimension_numbers = #tpu.dot_dimension_numbers<[1], [0], [0], [1], [0, 0, 1, 1], [], []>} : vector<8x16xf32>, vector<16x16xf32>, vector<8x16xf32> -> vector<8x16xf32>
    %68 = arith.addf %48, %67 : vector<8x16xf32>
    %69 = vector.extract_strided_slice %6 {offsets = [0, 48], sizes = [8, 16], strides = [1, 1]} : vector<8x384xf32> to vector<8x16xf32>
    %70 = vector.extract_strided_slice %6 {offsets = [0, 176], sizes = [8, 16], strides = [1, 1]} : vector<8x384xf32> to vector<8x16xf32>
    %71 = vector.extract_strided_slice %6 {offsets = [0, 304], sizes = [8, 16], strides = [1, 1]} : vector<8x384xf32> to vector<8x16xf32>
    %cst_27 = arith.constant dense<0.000000e+00> : vector<8x8xf32>
    %72 = tpu.matmul %69, %70, %cst_27 {dimension_numbers = #tpu.dot_dimension_numbers<[1], [1], [0], [0], [0, 0, 1, 0], [], []>} : vector<8x16xf32>, vector<8x16xf32>, vector<8x8xf32> -> vector<8x8xf32>
    %cst_28 = arith.constant 2.500000e-01 : f32
    %73 = vector.broadcast %cst_28 : f32 to vector<8x8xf32>
    %74 = arith.mulf %72, %73 : vector<8x8xf32>
    %cst_29 = arith.constant dense<0xFF800000> : vector<8xf32>
    %75 = vector.multi_reduction <maximumf>, %74, %cst_29 [1] : vector<8x8xf32> to vector<8xf32>
    %76 = vector.shape_cast %75 : vector<8xf32> to vector<8x1xf32>
    %77 = vector.broadcast %76 : vector<8x1xf32> to vector<8x8xf32>
    %78 = arith.subf %74, %77 : vector<8x8xf32>
    %79 = math.exp %78 : vector<8x8xf32>
    %cst_30 = arith.constant dense<0.000000e+00> : vector<8xf32>
    %80 = vector.multi_reduction <add>, %79, %cst_30 [1] : vector<8x8xf32> to vector<8xf32>
    %81 = vector.shape_cast %80 : vector<8xf32> to vector<8x1xf32>
    %82 = tpu.reciprocal %81 {approx = true} : vector<8x1xf32> -> vector<8x1xf32>
    %83 = vector.broadcast %82 : vector<8x1xf32> to vector<8x8xf32>
    %84 = arith.mulf %79, %83 : vector<8x8xf32>
    %cst_31 = arith.constant dense<0.000000e+00> : vector<8x16xf32>
    %85 = tpu.matmul %84, %71, %cst_31 {dimension_numbers = #tpu.dot_dimension_numbers<[1], [0], [0], [1], [0, 0, 1, 1], [], []>} : vector<8x8xf32>, vector<8x16xf32>, vector<8x16xf32> -> vector<8x16xf32>
    %86 = vector.extract_strided_slice %7 {offsets = [48, 0], sizes = [16, 16], strides = [1, 1]} : vector<128x16xf32> to vector<16x16xf32>
    %cst_32 = arith.constant dense<0.000000e+00> : vector<8x16xf32>
    %87 = tpu.matmul %85, %86, %cst_32 {dimension_numbers = #tpu.dot_dimension_numbers<[1], [0], [0], [1], [0, 0, 1, 1], [], []>} : vector<8x16xf32>, vector<16x16xf32>, vector<8x16xf32> -> vector<8x16xf32>
    %88 = arith.addf %68, %87 : vector<8x16xf32>
    %89 = vector.extract_strided_slice %6 {offsets = [0, 64], sizes = [8, 16], strides = [1, 1]} : vector<8x384xf32> to vector<8x16xf32>
    %90 = vector.extract_strided_slice %6 {offsets = [0, 192], sizes = [8, 16], strides = [1, 1]} : vector<8x384xf32> to vector<8x16xf32>
    %91 = vector.extract_strided_slice %6 {offsets = [0, 320], sizes = [8, 16], strides = [1, 1]} : vector<8x384xf32> to vector<8x16xf32>
    %cst_33 = arith.constant dense<0.000000e+00> : vector<8x8xf32>
    %92 = tpu.matmul %89, %90, %cst_33 {dimension_numbers = #tpu.dot_dimension_numbers<[1], [1], [0], [0], [0, 0, 1, 0], [], []>} : vector<8x16xf32>, vector<8x16xf32>, vector<8x8xf32> -> vector<8x8xf32>
    %cst_34 = arith.constant 2.500000e-01 : f32
    %93 = vector.broadcast %cst_34 : f32 to vector<8x8xf32>
    %94 = arith.mulf %92, %93 : vector<8x8xf32>
    %cst_35 = arith.constant dense<0xFF800000> : vector<8xf32>
    %95 = vector.multi_reduction <maximumf>, %94, %cst_35 [1] : vector<8x8xf32> to vector<8xf32>
    %96 = vector.shape_cast %95 : vector<8xf32> to vector<8x1xf32>
    %97 = vector.broadcast %96 : vector<8x1xf32> to vector<8x8xf32>
    %98 = arith.subf %94, %97 : vector<8x8xf32>
    %99 = math.exp %98 : vector<8x8xf32>
    %cst_36 = arith.constant dense<0.000000e+00> : vector<8xf32>
    %100 = vector.multi_reduction <add>, %99, %cst_36 [1] : vector<8x8xf32> to vector<8xf32>
    %101 = vector.shape_cast %100 : vector<8xf32> to vector<8x1xf32>
    %102 = tpu.reciprocal %101 {approx = true} : vector<8x1xf32> -> vector<8x1xf32>
    %103 = vector.broadcast %102 : vector<8x1xf32> to vector<8x8xf32>
    %104 = arith.mulf %99, %103 : vector<8x8xf32>
    %cst_37 = arith.constant dense<0.000000e+00> : vector<8x16xf32>
    %105 = tpu.matmul %104, %91, %cst_37 {dimension_numbers = #tpu.dot_dimension_numbers<[1], [0], [0], [1], [0, 0, 1, 1], [], []>} : vector<8x8xf32>, vector<8x16xf32>, vector<8x16xf32> -> vector<8x16xf32>
    %106 = vector.extract_strided_slice %7 {offsets = [64, 0], sizes = [16, 16], strides = [1, 1]} : vector<128x16xf32> to vector<16x16xf32>
    %cst_38 = arith.constant dense<0.000000e+00> : vector<8x16xf32>
    %107 = tpu.matmul %105, %106, %cst_38 {dimension_numbers = #tpu.dot_dimension_numbers<[1], [0], [0], [1], [0, 0, 1, 1], [], []>} : vector<8x16xf32>, vector<16x16xf32>, vector<8x16xf32> -> vector<8x16xf32>
    %108 = arith.addf %88, %107 : vector<8x16xf32>
    %109 = vector.extract_strided_slice %6 {offsets = [0, 80], sizes = [8, 16], strides = [1, 1]} : vector<8x384xf32> to vector<8x16xf32>
    %110 = vector.extract_strided_slice %6 {offsets = [0, 208], sizes = [8, 16], strides = [1, 1]} : vector<8x384xf32> to vector<8x16xf32>
    %111 = vector.extract_strided_slice %6 {offsets = [0, 336], sizes = [8, 16], strides = [1, 1]} : vector<8x384xf32> to vector<8x16xf32>
    %cst_39 = arith.constant dense<0.000000e+00> : vector<8x8xf32>
    %112 = tpu.matmul %109, %110, %cst_39 {dimension_numbers = #tpu.dot_dimension_numbers<[1], [1], [0], [0], [0, 0, 1, 0], [], []>} : vector<8x16xf32>, vector<8x16xf32>, vector<8x8xf32> -> vector<8x8xf32>
    %cst_40 = arith.constant 2.500000e-01 : f32
    %113 = vector.broadcast %cst_40 : f32 to vector<8x8xf32>
    %114 = arith.mulf %112, %113 : vector<8x8xf32>
    %cst_41 = arith.constant dense<0xFF800000> : vector<8xf32>
    %115 = vector.multi_reduction <maximumf>, %114, %cst_41 [1] : vector<8x8xf32> to vector<8xf32>
    %116 = vector.shape_cast %115 : vector<8xf32> to vector<8x1xf32>
    %117 = vector.broadcast %116 : vector<8x1xf32> to vector<8x8xf32>
    %118 = arith.subf %114, %117 : vector<8x8xf32>
    %119 = math.exp %118 : vector<8x8xf32>
    %cst_42 = arith.constant dense<0.000000e+00> : vector<8xf32>
    %120 = vector.multi_reduction <add>, %119, %cst_42 [1] : vector<8x8xf32> to vector<8xf32>
    %121 = vector.shape_cast %120 : vector<8xf32> to vector<8x1xf32>
    %122 = tpu.reciprocal %121 {approx = true} : vector<8x1xf32> -> vector<8x1xf32>
    %123 = vector.broadcast %122 : vector<8x1xf32> to vector<8x8xf32>
    %124 = arith.mulf %119, %123 : vector<8x8xf32>
    %cst_43 = arith.constant dense<0.000000e+00> : vector<8x16xf32>
    %125 = tpu.matmul %124, %111, %cst_43 {dimension_numbers = #tpu.dot_dimension_numbers<[1], [0], [0], [1], [0, 0, 1, 1], [], []>} : vector<8x8xf32>, vector<8x16xf32>, vector<8x16xf32> -> vector<8x16xf32>
    %126 = vector.extract_strided_slice %7 {offsets = [80, 0], sizes = [16, 16], strides = [1, 1]} : vector<128x16xf32> to vector<16x16xf32>
    %cst_44 = arith.constant dense<0.000000e+00> : vector<8x16xf32>
    %127 = tpu.matmul %125, %126, %cst_44 {dimension_numbers = #tpu.dot_dimension_numbers<[1], [0], [0], [1], [0, 0, 1, 1], [], []>} : vector<8x16xf32>, vector<16x16xf32>, vector<8x16xf32> -> vector<8x16xf32>
    %128 = arith.addf %108, %127 : vector<8x16xf32>
    %129 = vector.extract_strided_slice %6 {offsets = [0, 96], sizes = [8, 16], strides = [1, 1]} : vector<8x384xf32> to vector<8x16xf32>
    %130 = vector.extract_strided_slice %6 {offsets = [0, 224], sizes = [8, 16], strides = [1, 1]} : vector<8x384xf32> to vector<8x16xf32>
    %131 = vector.extract_strided_slice %6 {offsets = [0, 352], sizes = [8, 16], strides = [1, 1]} : vector<8x384xf32> to vector<8x16xf32>
    %cst_45 = arith.constant dense<0.000000e+00> : vector<8x8xf32>
    %132 = tpu.matmul %129, %130, %cst_45 {dimension_numbers = #tpu.dot_dimension_numbers<[1], [1], [0], [0], [0, 0, 1, 0], [], []>} : vector<8x16xf32>, vector<8x16xf32>, vector<8x8xf32> -> vector<8x8xf32>
    %cst_46 = arith.constant 2.500000e-01 : f32
    %133 = vector.broadcast %cst_46 : f32 to vector<8x8xf32>
    %134 = arith.mulf %132, %133 : vector<8x8xf32>
    %cst_47 = arith.constant dense<0xFF800000> : vector<8xf32>
    %135 = vector.multi_reduction <maximumf>, %134, %cst_47 [1] : vector<8x8xf32> to vector<8xf32>
    %136 = vector.shape_cast %135 : vector<8xf32> to vector<8x1xf32>
    %137 = vector.broadcast %136 : vector<8x1xf32> to vector<8x8xf32>
    %138 = arith.subf %134, %137 : vector<8x8xf32>
    %139 = math.exp %138 : vector<8x8xf32>
    %cst_48 = arith.constant dense<0.000000e+00> : vector<8xf32>
    %140 = vector.multi_reduction <add>, %139, %cst_48 [1] : vector<8x8xf32> to vector<8xf32>
    %141 = vector.shape_cast %140 : vector<8xf32> to vector<8x1xf32>
    %142 = tpu.reciprocal %141 {approx = true} : vector<8x1xf32> -> vector<8x1xf32>
    %143 = vector.broadcast %142 : vector<8x1xf32> to vector<8x8xf32>
    %144 = arith.mulf %139, %143 : vector<8x8xf32>
    %cst_49 = arith.constant dense<0.000000e+00> : vector<8x16xf32>
    %145 = tpu.matmul %144, %131, %cst_49 {dimension_numbers = #tpu.dot_dimension_numbers<[1], [0], [0], [1], [0, 0, 1, 1], [], []>} : vector<8x8xf32>, vector<8x16xf32>, vector<8x16xf32> -> vector<8x16xf32>
    %146 = vector.extract_strided_slice %7 {offsets = [96, 0], sizes = [16, 16], strides = [1, 1]} : vector<128x16xf32> to vector<16x16xf32>
    %cst_50 = arith.constant dense<0.000000e+00> : vector<8x16xf32>
    %147 = tpu.matmul %145, %146, %cst_50 {dimension_numbers = #tpu.dot_dimension_numbers<[1], [0], [0], [1], [0, 0, 1, 1], [], []>} : vector<8x16xf32>, vector<16x16xf32>, vector<8x16xf32> -> vector<8x16xf32>
    %148 = arith.addf %128, %147 : vector<8x16xf32>
    %149 = vector.extract_strided_slice %6 {offsets = [0, 112], sizes = [8, 16], strides = [1, 1]} : vector<8x384xf32> to vector<8x16xf32>
    %150 = vector.extract_strided_slice %6 {offsets = [0, 240], sizes = [8, 16], strides = [1, 1]} : vector<8x384xf32> to vector<8x16xf32>
    %151 = vector.extract_strided_slice %6 {offsets = [0, 368], sizes = [8, 16], strides = [1, 1]} : vector<8x384xf32> to vector<8x16xf32>
    %cst_51 = arith.constant dense<0.000000e+00> : vector<8x8xf32>
    %152 = tpu.matmul %149, %150, %cst_51 {dimension_numbers = #tpu.dot_dimension_numbers<[1], [1], [0], [0], [0, 0, 1, 0], [], []>} : vector<8x16xf32>, vector<8x16xf32>, vector<8x8xf32> -> vector<8x8xf32>
    %cst_52 = arith.constant 2.500000e-01 : f32
    %153 = vector.broadcast %cst_52 : f32 to vector<8x8xf32>
    %154 = arith.mulf %152, %153 : vector<8x8xf32>
    %cst_53 = arith.constant dense<0xFF800000> : vector<8xf32>
    %155 = vector.multi_reduction <maximumf>, %154, %cst_53 [1] : vector<8x8xf32> to vector<8xf32>
    %156 = vector.shape_cast %155 : vector<8xf32> to vector<8x1xf32>
    %157 = vector.broadcast %156 : vector<8x1xf32> to vector<8x8xf32>
    %158 = arith.subf %154, %157 : vector<8x8xf32>
    %159 = math.exp %158 : vector<8x8xf32>
    %cst_54 = arith.constant dense<0.000000e+00> : vector<8xf32>
    %160 = vector.multi_reduction <add>, %159, %cst_54 [1] : vector<8x8xf32> to vector<8xf32>
    %161 = vector.shape_cast %160 : vector<8xf32> to vector<8x1xf32>
    %162 = tpu.reciprocal %161 {approx = true} : vector<8x1xf32> -> vector<8x1xf32>
    %163 = vector.broadcast %162 : vector<8x1xf32> to vector<8x8xf32>
    %164 = arith.mulf %159, %163 : vector<8x8xf32>
    %cst_55 = arith.constant dense<0.000000e+00> : vector<8x16xf32>
    %165 = tpu.matmul %164, %151, %cst_55 {dimension_numbers = #tpu.dot_dimension_numbers<[1], [0], [0], [1], [0, 0, 1, 1], [], []>} : vector<8x8xf32>, vector<8x16xf32>, vector<8x16xf32> -> vector<8x16xf32>
    %166 = vector.extract_strided_slice %7 {offsets = [112, 0], sizes = [16, 16], strides = [1, 1]} : vector<128x16xf32> to vector<16x16xf32>
    %cst_56 = arith.constant dense<0.000000e+00> : vector<8x16xf32>
    %167 = tpu.matmul %165, %166, %cst_56 {dimension_numbers = #tpu.dot_dimension_numbers<[1], [0], [0], [1], [0, 0, 1, 1], [], []>} : vector<8x16xf32>, vector<16x16xf32>, vector<8x16xf32> -> vector<8x16xf32>
    %168 = arith.addf %148, %167 : vector<8x16xf32>
    %c0_57 = arith.constant 0 : index
    %c0_58 = arith.constant 0 : index
    %169 = vector.load %arg5[%c0_57, %c0_58] : memref<1x16xf32, #tpu.memory_space<vmem>>, vector<1x16xf32>
    %170 = vector.broadcast %169 : vector<1x16xf32> to vector<8x16xf32>
    %171 = arith.addf %168, %170 : vector<8x16xf32>
    %c0_59 = arith.constant 0 : index
    %c0_60 = arith.constant 0 : index
    %c0_61 = arith.constant 0 : index
    %172 = vector.load %arg6[%c0_59, %c0_60, %c0_61] : memref<1x8x16xf32, #tpu.memory_space<vmem>>, vector<1x8x16xf32>
    %173 = vector.shape_cast %172 : vector<1x8x16xf32> to vector<8x16xf32>
    %174 = vector.shape_cast %171 : vector<8x16xf32> to vector<1x8x16xf32>
    tpu.vector_store %arg6[%c0_59, %c0_60, %c0_61], %174 {strides = array<i32>} : memref<1x8x16xf32, #tpu.memory_space<vmem>>, vector<1x8x16xf32>,
    return
  }
  func.func @transform_0(%arg0: i32) -> (i32, i32, i32) {
    %c0_i32 = arith.constant 0 : i32
    %c0_i32_0 = arith.constant 0 : i32
    %c0_i32_1 = arith.constant 0 : i32
    return %arg0, %c0_i32, %c0_i32_0 : i32, i32, i32
  }
  func.func @transform_1(%arg0: i32) -> (i32, i32) {
    %c0_i32 = arith.constant 0 : i32
    %c0_i32_0 = arith.constant 0 : i32
    %c0_i32_1 = arith.constant 0 : i32
    return %c0_i32, %c0_i32_0 : i32, i32
  }
  func.func @transform_2(%arg0: i32) -> (i32, i32) {
    %c0_i32 = arith.constant 0 : i32
    %c0_i32_0 = arith.constant 0 : i32
    %c0_i32_1 = arith.constant 0 : i32
    return %c0_i32, %c0_i32_0 : i32, i32
  }
  func.func @transform_3(%arg0: i32) -> (i32, i32) {
    %c0_i32 = arith.constant 0 : i32
    %c0_i32_0 = arith.constant 0 : i32
    %c0_i32_1 = arith.constant 0 : i32
    return %c0_i32, %c0_i32_0 : i32, i32
  }
  func.func @transform_4(%arg0: i32) -> (i32, i32) {
    %c0_i32 = arith.constant 0 : i32
    %c0_i32_0 = arith.constant 0 : i32
    %c0_i32_1 = arith.constant 0 : i32
    return %c0_i32, %c0_i32_0 : i32, i32
  }
  func.func @transform_5(%arg0: i32) -> (i32, i32, i32) {
    %c0_i32 = arith.constant 0 : i32
    %c0_i32_0 = arith.constant 0 : i32
    %c0_i32_1 = arith.constant 0 : i32
    return %arg0, %c0_i32, %c0_i32_0 : i32, i32, i32
  }
}

</mosaic_0001>

<llo_original>
// kernel: tpu_custom_call.1
$region0: #{tpu_custom_call.1}
  #allocation0 [shape = 'u32[]', space=smem, size = 0x4, offset = 0x4, fixed_abs, tag = 'smem constant byte address 0x4 - core index']
  #allocation1 [shape = 'u32[144,128]{1,0:T(1,128)}', space=vmem, size = 0x12000, scoped, tag = 'internal scratch']
  %s0 = inlined_call_operand.vmem [shape: f32[2,8,32], index: 0, kind: input, shape index: {}]
  %s1 = inlined_call_operand.vmem [shape: f32[32,384], index: 1, kind: input, shape index: {}]
  %s2 = inlined_call_operand.vmem [shape: f32[1,384], index: 2, kind: input, shape index: {}]
  %s3 = inlined_call_operand.vmem [shape: f32[128,16], index: 3, kind: input, shape index: {}]
  %s4 = inlined_call_operand.vmem [shape: f32[1,16], index: 4, kind: input, shape index: {}]
  %s5 = inlined_call_operand.hbm [shape: f32[2,8,16], index: 5, kind: output, shape index: {}]
  %s6 = sld [smem:[#allocation0]]
  $region53: #{tpu_custom_call.1} parent=0
    _
  %s8 = ssub.s32 1, %s6
  %s9 = scalar_select 0, %s8, %s6
  $region1: #{tpu_custom_call.1} parent=0
    #allocation2 [shape = 'u8[8192]{0}', space=vmem, size = 0x2000, scoped, tag = 'output window, operand 0']
    #allocation3 [shape = 's32[2]{0}', space=sflag, size = 0x8, scoped, tag = 'scoped memory for tpu_custom_call.1']
    %10 = vsyncpa [#allocation3], 0
    %s11 = scalar_lea.sflag [#allocation3], 1
    %12 = vsyncpa %s11, 0
    loop: start=0, step=1, limit=4
    $region2: #{tpu_custom_call.1} parent=1 // loop_pre_header
      _
    $region3: #{tpu_custom_call.1} parent=1 // loop_header
      %s14 = sphi 0, %s18
      %p15 = scmp.ge.s32.totalorder %s14, 4
      %s24 = sphi 0, %s26
      %s27 = sphi 0, %s24
      %s28 = sphi 0, %s27
      %s44 = sphi 0, %s28
      %s48 = sphi 0, %s48
      %s50 = sphi 0, %s48
      %s51 = sphi 0, %s50
      %s65 = sphi 0, %s51
      %s69 = sphi 0, %s69
      %s71 = sphi 0, %s69
      %s72 = sphi 0, %s71
      %s86 = sphi 0, %s72
      %s90 = sphi 0, %s90
      %s92 = sphi 0, %s90
      %s93 = sphi 0, %s92
      %s107 = sphi 0, %s93
      %s111 = sphi 0, %s111
      %s113 = sphi 0, %s111
      %s114 = sphi 0, %s113
      %s128 = sphi 0, %s114
      %s134 = sphi 0, %s136
      %s137 = sphi 0, %s134
      %s138 = sphi 0, %s137
      %s154 = sphi 0, %s138
    $region4: #{tpu_custom_call.1} parent=1 // loop_header_branch
      %17 = sbr.rel (%p15) target = $region8
    $region5: #{tpu_custom_call.1} parent=1 // loop_body
      %s19 = ssub.s32 %s14, 1
      %s20 = ssub.s32 %s14, 2
      %s21 = sadd.s32 %s14, 1
      %s22 = ssub.s32 %s14, %s21
      %p23 = scmp.eq.s32.totalorder %s22, 0
      %s25 = sadd.s32 %s24, 1
      %s26 = scalar_select %p23, %s24, %s25
      %p29 = pneg %p23
      %p30 = scmp.eq.s32.totalorder %s14, 1
      %p31 = por %p29, %p30
      %p32 = scmp.ne.s32.totalorder %s24, %s27
      %p33 = scmp.eq.s32.totalorder %s14, 0
      %p34 = por %p32, %p33
      %p35 = scmp.ne.s32.totalorder %s24, %s27
      %p36 = scmp.eq.s32.totalorder %s19, 1
      %p37 = por %p35, %p36
      %p38 = scmp.ne.s32.totalorder %s27, %s28
      %p39 = scmp.eq.s32.totalorder %s19, 0
      %p40 = por %p38, %p39
      %p41 = scmp.ne.s32.totalorder %s27, %s28
      %p42 = scmp.eq.s32.totalorder %s20, 1
      %p43 = por %p41, %p42
      %p45 = scmp.ne.s32.totalorder %s28, %s44
      %p46 = scmp.eq.s32.totalorder %s20, 0
      %p47 = por %p45, %p46
      %s49 = sadd.s32 %s48, 1
      %p52 = scmp.eq.s32.totalorder %s14, 1
      %p53 = scmp.ne.s32.totalorder %s48, %s50
      %p54 = scmp.eq.s32.totalorder %s14, 0
      %p55 = por %p53, %p54
      %p56 = scmp.ne.s32.totalorder %s48, %s50
      %p57 = scmp.eq.s32.totalorder %s19, 1
      %p58 = por %p56, %p57
      %p59 = scmp.ne.s32.totalorder %s50, %s51
      %p60 = scmp.eq.s32.totalorder %s19, 0
      %p61 = por %p59, %p60
      %p62 = scmp.ne.s32.totalorder %s50, %s51
      %p63 = scmp.eq.s32.totalorder %s20, 1
      %p64 = por %p62, %p63
      %p66 = scmp.ne.s32.totalorder %s51, %s65
      %p67 = scmp.eq.s32.totalorder %s20, 0
      %p68 = por %p66, %p67
      %s70 = sadd.s32 %s69, 1
      %p73 = scmp.eq.s32.totalorder %s14, 1
      %p74 = scmp.ne.s32.totalorder %s69, %s71
      %p75 = scmp.eq.s32.totalorder %s14, 0
      %p76 = por %p74, %p75
      %p77 = scmp.ne.s32.totalorder %s69, %s71
      %p78 = scmp.eq.s32.totalorder %s19, 1
      %p79 = por %p77, %p78
      %p80 = scmp.ne.s32.totalorder %s71, %s72
      %p81 = scmp.eq.s32.totalorder %s19, 0
      %p82 = por %p80, %p81
      %p83 = scmp.ne.s32.totalorder %s71, %s72
      %p84 = scmp.eq.s32.totalorder %s20, 1
      %p85 = por %p83, %p84
      %p87 = scmp.ne.s32.totalorder %s72, %s86
      %p88 = scmp.eq.s32.totalorder %s20, 0
      %p89 = por %p87, %p88
      %s91 = sadd.s32 %s90, 1
      %p94 = scmp.eq.s32.totalorder %s14, 1
      %p95 = scmp.ne.s32.totalorder %s90, %s92
      %p96 = scmp.eq.s32.totalorder %s14, 0
      %p97 = por %p95, %p96
      %p98 = scmp.ne.s32.totalorder %s90, %s92
      %p99 = scmp.eq.s32.totalorder %s19, 1
      %p100 = por %p98, %p99
      %p101 = scmp.ne.s32.totalorder %s92, %s93
      %p102 = scmp.eq.s32.totalorder %s19, 0
      %p103 = por %p101, %p102
      %p104 = scmp.ne.s32.totalorder %s92, %s93
      %p105 = scmp.eq.s32.totalorder %s20, 1
      %p106 = por %p104, %p105
      %p108 = scmp.ne.s32.totalorder %s93, %s107
      %p109 = scmp.eq.s32.totalorder %s20, 0
      %p110 = por %p108, %p109
      %s112 = sadd.s32 %s111, 1
      %p115 = scmp.eq.s32.totalorder %s14, 1
      %p116 = scmp.ne.s32.totalorder %s111, %s113
      %p117 = scmp.eq.s32.totalorder %s14, 0
      %p118 = por %p116, %p117
      %p119 = scmp.ne.s32.totalorder %s111, %s113
      %p120 = scmp.eq.s32.totalorder %s19, 1
      %p121 = por %p119, %p120
      %p122 = scmp.ne.s32.totalorder %s113, %s114
      %p123 = scmp.eq.s32.totalorder %s19, 0
      %p124 = por %p122, %p123
      %p125 = scmp.ne.s32.totalorder %s113, %s114
      %p126 = scmp.eq.s32.totalorder %s20, 1
      %p127 = por %p125, %p126
      %p129 = scmp.ne.s32.totalorder %s114, %s128
      %p130 = scmp.eq.s32.totalorder %s20, 0
      %p131 = por %p129, %p130
      %s132 = ssub.s32 %s14, %s21
      %p133 = scmp.eq.s32.totalorder %s132, 0
      %s135 = sadd.s32 %s134, 1
      %s136 = scalar_select %p133, %s134, %s135
      %p139 = pneg %p133
      %p140 = scmp.eq.s32.totalorder %s14, 1
      %p141 = por %p139, %p140
      %p142 = scmp.ne.s32.totalorder %s134, %s137
      %p143 = scmp.eq.s32.totalorder %s14, 0
      %p144 = por %p142, %p143
      %p145 = scmp.ne.s32.totalorder %s134, %s137
      %p146 = scmp.eq.s32.totalorder %s19, 1
      %p147 = por %p145, %p146
      %p148 = scmp.ne.s32.totalorder %s137, %s138
      %p149 = scmp.eq.s32.totalorder %s19, 0
      %p150 = por %p148, %p149
      %p151 = scmp.ne.s32.totalorder %s137, %s138
      %p152 = scmp.eq.s32.totalorder %s20, 1
      %p153 = por %p151, %p152
      %p155 = scmp.ne.s32.totalorder %s138, %s154
      %p156 = scmp.eq.s32.totalorder %s20, 0
      %p157 = por %p155, %p156
      %p158 = scmp.le.s32.totalorder 1, %s14
      %p159 = scmp.lt.s32.totalorder %s14, 3
      %p160 = pnand %p158, %p159
      %p161 = pneg %p160
      // Predicated region
      $region9: #{tpu_custom_call.1} parent=5 // pred_check
        _
      $region10: #{tpu_custom_call.1} parent=5 // pred_check_branch
        %163 = sbr.rel (%p160) target = $region12
      $region11: #{tpu_custom_call.1} parent=5 // pred_region
        %s164 = ssub.s32 %s14, 1
        // Predicated region
        $region13: #{tpu_custom_call.1} parent=11 // pred_check
          %p165 = pneg %p61
        $region14: #{tpu_custom_call.1} parent=11 // pred_check_branch
          %167 = sbr.rel (%p165) target = $region16
        $region15: #{tpu_custom_call.1} parent=11 // pred_region
          _
        $region16: #{tpu_custom_call.1} parent=11 // pred_fallthru
          _
        // Predicated region
        $region17: #{tpu_custom_call.1} parent=11 // pred_check
          %p168 = pneg %p82
        $region18: #{tpu_custom_call.1} parent=11 // pred_check_branch
          %170 = sbr.rel (%p168) target = $region20
        $region19: #{tpu_custom_call.1} parent=11 // pred_region
          _
        $region20: #{tpu_custom_call.1} parent=11 // pred_fallthru
          _
        // Predicated region
        $region21: #{tpu_custom_call.1} parent=11 // pred_check
          %p171 = pneg %p103
        $region22: #{tpu_custom_call.1} parent=11 // pred_check_branch
          %173 = sbr.rel (%p171) target = $region24
        $region23: #{tpu_custom_call.1} parent=11 // pred_region
          _
        $region24: #{tpu_custom_call.1} parent=11 // pred_fallthru
          _
        // Predicated region
        $region25: #{tpu_custom_call.1} parent=11 // pred_check
          %p174 = pneg %p124
        $region26: #{tpu_custom_call.1} parent=11 // pred_check_branch
          %176 = sbr.rel (%p174) target = $region28
        $region27: #{tpu_custom_call.1} parent=11 // pred_region
          _
        $region28: #{tpu_custom_call.1} parent=11 // pred_fallthru
          _
      $region12: #{tpu_custom_call.1} parent=5 // pred_fallthru
        _
      %p177 = scmp.lt.s32.totalorder %s14, 2
      // Predicated region
      $region29: #{tpu_custom_call.1} parent=5 // pred_check
        %p178 = pneg %p177
      $region30: #{tpu_custom_call.1} parent=5 // pred_check_branch
        %180 = sbr.rel (%p178) target = $region32
      $region31: #{tpu_custom_call.1} parent=5 // pred_region
        // Predicated region
        $region33: #{tpu_custom_call.1} parent=31 // pred_check
          %p181 = pneg %p34
        $region34: #{tpu_custom_call.1} parent=31 // pred_check_branch
          %183 = sbr.rel (%p181) target = $region36
        $region35: #{tpu_custom_call.1} parent=31 // pred_region
          %p184 = scmp.lt.s32.totalorder %s14, 1
          %s185 = scalar_select %p184, %s14, 1
          %s186 = smul.addr %s185, 8
          %s187 = scalar_lea.vmem %s0, %s186
        $region36: #{tpu_custom_call.1} parent=31 // pred_fallthru
          _
      $region32: #{tpu_custom_call.1} parent=5 // pred_fallthru
        _
      %p188 = scmp.le.s32.totalorder 1, %s14
      %p189 = scmp.lt.s32.totalorder %s14, 3
      %p190 = pnand %p188, %p189
      %p191 = pneg %p190
      // Predicated region
      $region37: #{tpu_custom_call.1} parent=5 // pred_check
        _
      $region38: #{tpu_custom_call.1} parent=5 // pred_check_branch
        %193 = sbr.rel (%p190) target = $region40
      $region39: #{tpu_custom_call.1} parent=5 // pred_region
        %s194 = ssub.s32 %s14, 1
        %p195 = scmp.lt.s32.totalorder %s19, 1
        %s196 = scalar_select %p195, %s19, 1
        %s197 = smul.addr %s196, 8
        %s198 = scalar_lea.vmem %s0, %s197
        %p199 = pneg %p40
        %p200 = pneg %p37
        %p201 = pneg %p61
        %p202 = pneg %p58
        %p203 = pneg %p82
        %p204 = pneg %p79
        %p205 = pneg %p103
        %p206 = pneg %p100
        %p207 = pneg %p124
        %p208 = pneg %p121
        %p209 = pneg %p150
        %p210 = pneg %p147
        %s211 = sand.u32 %s137, 1
        %s212 = scalar_lea.sflag [#allocation3], %s211
        %s213 = sand.u32 %s137, 1
        %s214 = smul.addr %s213, 8
        %s215 = scalar_lea.vmem [#allocation2], %s214
        %p216 = scmp.lt.s32.totalorder %s19, 1
        %s217 = scalar_select %p216, %s19, 1
        %s218 = smul.addr %s217, 8
        %s219 = scalar_lea.vmem %s0, %s218
        %v220 = vld [vmem:[%s219] sm:$0xff]
        %v221 = vld [vmem:[%s1] sm:$0xff]
        %v222 = vld [vmem:[%s1 + $0x8] sm:$0xff]
        %v223 = vld [vmem:[%s1 + $0x10] sm:$0xff]
        %v224 = vld [vmem:[%s1 + $0x18] sm:$0xff]
        %v225 = vld [vmem:[%s1 + $0x20] sm:$0xff]
        %v226 = vld [vmem:[%s1 + $0x28] sm:$0xff]
        %v227 = vld [vmem:[%s1 + $0x30] sm:$0xff]
        %v228 = vld [vmem:[%s1 + $0x38] sm:$0xff]
        %v229 = vld [vmem:[%s1 + $0x40] sm:$0xff]
        %v230 = vld [vmem:[%s1 + $0x48] sm:$0xff]
        %v231 = vld [vmem:[%s1 + $0x50] sm:$0xff]
        %v232 = vld [vmem:[%s1 + $0x58] sm:$0xff]
        %v233 = vld [vmem:[%s2] sm:$0x7]
        %v235 = vlaneseq
        %v236 = vshrl.u32 %v235, 7
        %v237 = vsub.s32 0, %v236
        %v238 = vrot.slane %v233, %v237
        %v239 = vlaneseq
        %v240 = vshrl.u32 %v239, 7
        %v241 = vsub.s32 1, %v240
        %v242 = vrot.slane %v233, %v241
        %v243 = vlaneseq
        %v244 = vshrl.u32 %v243, 7
        %v245 = vsub.s32 2, %v244
        %v246 = vrot.slane %v233, %v245
        %vm250 = vcmask 261120
        %v252 = vsel %vm250, %v220, 0
        %254 = vmatprep.subr.mxu0 %v222
        %255 = vmatpush1.msra.mxu0 %v221
        %256 = vmatprep.subr.mxu0 %v225
        %257 = vmatpush1.msra.mxu0 %v224
        %258 = vmatprep.subr.mxu0 %v228
        %259 = vmatpush1.msra.mxu0 %v227
        %260 = vmatprep.subr.mxu0 %v231
        %261 = vmatpush1.msra.mxu0 %v230
        %262 = vmatprep.subr.mxu0 0.0
        %263 = vmatpush1.msra.mxu0 0.0
        %264 = vmatprep.subr.mxu0 0.0
        %265 = vmatpush1.msra.mxu0 0.0
        %266 = vmatprep.subr.mxu0 0.0
        %267 = vmatpush1.msra.mxu0 0.0
        %268 = vmatprep.subr.mxu0 0.0
        %269 = vmatpush1.msra.mxu0 0.0
        %270 = vmatprep.subr.mxu0 0.0
        %271 = vmatpush1.msra.mxu0 0.0
        %272 = vmatprep.subr.mxu0 0.0
        %273 = vmatpush1.msra.mxu0 0.0
        %274 = vmatprep.subr.mxu0 0.0
        %275 = vmatpush1.msra.mxu0 0.0
        %276 = vmatprep.subr.mxu0 0.0
        %277 = vmatpush1.msra.mxu0 0.0
        %278 = vmatprep.subr.mxu0 0.0
        %279 = vmatpush1.msra.mxu0 0.0
        %280 = vmatprep.subr.mxu0 0.0
        %281 = vmatpush1.msra.mxu0 0.0
        %282 = vmatprep.subr.mxu0 0.0
        %283 = vmatpush1.msra.mxu0 0.0
        %284 = vmatprep.subr.mxu0 0.0
        %285 = vmatpush1.msra.mxu0 0.0
        %286 = vmatprep.subr.mxu0 0.0
        %287 = vmatpush1.msra.mxu0 0.0
        %288 = vmatprep.subr.mxu0 0.0
        %289 = vmatpush1.msra.mxu0 0.0
        %290 = vmatprep.subr.mxu0 0.0
        %291 = vmatpush1.msra.mxu0 0.0
        %292 = vmatprep.subr.mxu0 0.0
        %293 = vmatpush1.msra.mxu0 0.0
        %294 = vmatprep.subr.mxu0 0.0
        %295 = vmatpush1.msra.mxu0 0.0
        %296 = vmatprep.subr.mxu0 0.0
        %297 = vmatpush1.msra.mxu0 0.0
        %298 = vmatprep.subr.mxu0 0.0
        %299 = vmatpush1.msra.mxu0 0.0
        %300 = vmatprep.subr.mxu0 0.0
        %301 = vmatpush1.msra.mxu0 0.0
        %302 = vmatprep.subr.mxu0 0.0
        %303 = vmatpush1.msra.mxu0 0.0
        %304 = vmatprep.subr.mxu0 0.0
        %305 = vmatpush1.msra.mxu0 0.0
        %306 = vmatprep.subr.mxu0 0.0
        %307 = vmatpush1.msra.mxu0 0.0
        %308 = vmatprep.subr.mxu0 0.0
        %309 = vmatpush1.msra.mxu0 0.0
        %310 = vmatprep.subr.mxu0 0.0
        %311 = vmatpush1.msra.mxu0 0.0
        %312 = vmatprep.subr.mxu0 0.0
        %313 = vmatpush1.msra.mxu0 0.0
        %314 = vmatprep.subr.mxu0 0.0
        %315 = vmatpush1.msra.mxu0 0.0
        %316 = vmatprep.subr.mxu0 0.0
        %317 = vmatpush1.msra.mxu0 0.0
        %318 = vmatprep.mubr.f32.mxu0 0.0
        %319 = vmatmul.mubr.f32.gmra.mrb[0].mxu0 %v252
        %v320 = vpop.f32.mrb[0].mxu0
        %v321 = vadd.f32 %v238, %v320
        %v322 = vpop.f32.mrb[0].mxu0
        %v323 = vadd.f32 %v242, %v322
        %324 = vdwg.mxu0
        %325 = vmatprep.subr.mxu0 0.0
        %326 = vmatpush1.msra.mxu0 %v223
        %327 = vmatprep.subr.mxu0 0.0
        %328 = vmatpush1.msra.mxu0 %v226
        %329 = vmatprep.subr.mxu0 0.0
        %330 = vmatpush1.msra.mxu0 %v229
        %331 = vmatprep.subr.mxu0 0.0
        %332 = vmatpush1.msra.mxu0 %v232
        %333 = vmatprep.subr.mxu0 0.0
        %334 = vmatpush1.msra.mxu0 0.0
        %335 = vmatprep.subr.mxu0 0.0
        %336 = vmatpush1.msra.mxu0 0.0
        %337 = vmatprep.subr.mxu0 0.0
        %338 = vmatpush1.msra.mxu0 0.0
        %339 = vmatprep.subr.mxu0 0.0
        %340 = vmatpush1.msra.mxu0 0.0
        %341 = vmatprep.subr.mxu0 0.0
        %342 = vmatpush1.msra.mxu0 0.0
        %343 = vmatprep.subr.mxu0 0.0
        %344 = vmatpush1.msra.mxu0 0.0
        %345 = vmatprep.subr.mxu0 0.0
        %346 = vmatpush1.msra.mxu0 0.0
        %347 = vmatprep.subr.mxu0 0.0
        %348 = vmatpush1.msra.mxu0 0.0
        %349 = vmatprep.subr.mxu0 0.0
        %350 = vmatpush1.msra.mxu0 0.0
        %351 = vmatprep.subr.mxu0 0.0
        %352 = vmatpush1.msra.mxu0 0.0
        %353 = vmatprep.subr.mxu0 0.0
        %354 = vmatpush1.msra.mxu0 0.0
        %355 = vmatprep.subr.mxu0 0.0
        %356 = vmatpush1.msra.mxu0 0.0
        %357 = vmatprep.subr.mxu0 0.0
        %358 = vmatpush1.msra.mxu0 0.0
        %359 = vmatprep.subr.mxu0 0.0
        %360 = vmatpush1.msra.mxu0 0.0
        %361 = vmatprep.subr.mxu0 0.0
        %362 = vmatpush1.msra.mxu0 0.0
        %363 = vmatprep.subr.mxu0 0.0
        %364 = vmatpush1.msra.mxu0 0.0
        %365 = vmatprep.subr.mxu0 0.0
        %366 = vmatpush1.msra.mxu0 0.0
        %367 = vmatprep.subr.mxu0 0.0
        %368 = vmatpush1.msra.mxu0 0.0
        %369 = vmatprep.subr.mxu0 0.0
        %370 = vmatpush1.msra.mxu0 0.0
        %371 = vmatprep.subr.mxu0 0.0
        %372 = vmatpush1.msra.mxu0 0.0
        %373 = vmatprep.subr.mxu0 0.0
        %374 = vmatpush1.msra.mxu0 0.0
        %375 = vmatprep.subr.mxu0 0.0
        %376 = vmatpush1.msra.mxu0 0.0
        %377 = vmatprep.subr.mxu0 0.0
        %378 = vmatpush1.msra.mxu0 0.0
        %379 = vmatprep.subr.mxu0 0.0
        %380 = vmatpush1.msra.mxu0 0.0
        %381 = vmatprep.subr.mxu0 0.0
        %382 = vmatpush1.msra.mxu0 0.0
        %383 = vmatprep.subr.mxu0 0.0
        %384 = vmatpush1.msra.mxu0 0.0
        %385 = vmatprep.subr.mxu0 0.0
        %386 = vmatpush1.msra.mxu0 0.0
        %387 = vmatprep.subr.mxu0 0.0
        %388 = vmatpush1.msra.mxu0 0.0
        %389 = vmatprep.mubr.f32.mxu0 0.0
        %390 = vmatmul.mubr.f32.gmra.mrb[0].mxu0 %v252
        %v391 = vpop.f32.mrb[0].mxu0
        %v392 = vadd.f32 %v246, %v391
        %v393 = vpop.f32.mrb[0].mxu0
        %394 = vdwg.mxu0
        %v395 = vld [vmem:[%s3] sm:$0xff]
        %v396 = vld [vmem:[%s3 + $0x8] sm:$0xff]
        %v397 = vld [vmem:[%s3 + $0x10] sm:$0xff]
        %v398 = vld [vmem:[%s3 + $0x18] sm:$0xff]
        %v399 = vld [vmem:[%s3 + $0x20] sm:$0xff]
        %v400 = vld [vmem:[%s3 + $0x28] sm:$0xff]
        %v401 = vld [vmem:[%s3 + $0x30] sm:$0xff]
        %v402 = vld [vmem:[%s3 + $0x38] sm:$0xff]
        %v403 = vld [vmem:[%s3 + $0x40] sm:$0xff]
        %v404 = vld [vmem:[%s3 + $0x48] sm:$0xff]
        %v405 = vld [vmem:[%s3 + $0x50] sm:$0xff]
        %v406 = vld [vmem:[%s3 + $0x58] sm:$0xff]
        %v407 = vld [vmem:[%s3 + $0x60] sm:$0xff]
        %v408 = vld [vmem:[%s3 + $0x68] sm:$0xff]
        %v409 = vld [vmem:[%s3 + $0x70] sm:$0xff]
        %v410 = vld [vmem:[%s3 + $0x78] sm:$0xff]
        %vm411 = vcmask 130048
        %v413 = vsel %vm411, %v321, 0
        %v416 = vsel %vm411, %v323, 0
        %418 = vmatprep.subr.mxu0 0.0
        %419 = vmatpush1.xpose.msra.mxu0 %v416
        %420 = vmatprep.subr.mxu0 0.0
        %421 = vmatpush1.xpose.msra.mxu0 0.0
        %422 = vmatprep.subr.mxu0 0.0
        %423 = vmatpush1.xpose.msra.mxu0 0.0
        %424 = vmatprep.subr.mxu0 0.0
        %425 = vmatpush1.xpose.msra.mxu0 0.0
        %426 = vmatprep.subr.mxu0 0.0
        %427 = vmatpush1.xpose.msra.mxu0 0.0
        %428 = vmatprep.subr.mxu0 0.0
        %429 = vmatpush1.xpose.msra.mxu0 0.0
        %430 = vmatprep.subr.mxu0 0.0
        %431 = vmatpush1.xpose.msra.mxu0 0.0
        %432 = vmatprep.subr.mxu0 0.0
        %433 = vmatpush1.xpose.msra.mxu0 0.0
        %434 = vmatprep.subr.mxu0 0.0
        %435 = vmatpush1.xpose.msra.mxu0 0.0
        %436 = vmatprep.subr.mxu0 0.0
        %437 = vmatpush1.xpose.msra.mxu0 0.0
        %438 = vmatprep.subr.mxu0 0.0
        %439 = vmatpush1.xpose.msra.mxu0 0.0
        %440 = vmatprep.subr.mxu0 0.0
        %441 = vmatpush1.xpose.msra.mxu0 0.0
        %442 = vmatprep.subr.mxu0 0.0
        %443 = vmatpush1.xpose.msra.mxu0 0.0
        %444 = vmatprep.subr.mxu0 0.0
        %445 = vmatpush1.xpose.msra.mxu0 0.0
        %446 = vmatprep.subr.mxu0 0.0
        %447 = vmatpush1.xpose.msra.mxu0 0.0
        %448 = vmatprep.subr.mxu0 0.0
        %449 = vmatpush1.xpose.msra.mxu0 0.0
        %450 = vmatprep.subr.mxu0 0.0
        %451 = vmatpush1.xpose.msra.mxu0 0.0
        %452 = vmatprep.subr.mxu0 0.0
        %453 = vmatpush1.xpose.msra.mxu0 0.0
        %454 = vmatprep.subr.mxu0 0.0
        %455 = vmatpush1.xpose.msra.mxu0 0.0
        %456 = vmatprep.subr.mxu0 0.0
        %457 = vmatpush1.xpose.msra.mxu0 0.0
        %458 = vmatprep.subr.mxu0 0.0
        %459 = vmatpush1.xpose.msra.mxu0 0.0
        %460 = vmatprep.subr.mxu0 0.0
        %461 = vmatpush1.xpose.msra.mxu0 0.0
        %462 = vmatprep.subr.mxu0 0.0
        %463 = vmatpush1.xpose.msra.mxu0 0.0
        %464 = vmatprep.subr.mxu0 0.0
        %465 = vmatpush1.xpose.msra.mxu0 0.0
        %466 = vmatprep.subr.mxu0 0.0
        %467 = vmatpush1.xpose.msra.mxu0 0.0
        %468 = vmatprep.subr.mxu0 0.0
        %469 = vmatpush1.xpose.msra.mxu0 0.0
        %470 = vmatprep.subr.mxu0 0.0
        %471 = vmatpush1.xpose.msra.mxu0 0.0
        %472 = vmatprep.subr.mxu0 0.0
        %473 = vmatpush1.xpose.msra.mxu0 0.0
        %474 = vmatprep.subr.mxu0 0.0
        %475 = vmatpush1.xpose.msra.mxu0 0.0
        %476 = vmatprep.subr.mxu0 0.0
        %477 = vmatpush1.xpose.msra.mxu0 0.0
        %478 = vmatprep.subr.mxu0 0.0
        %479 = vmatpush1.xpose.msra.mxu0 0.0
        %480 = vmatprep.subr.mxu0 0.0
        %481 = vmatpush1.xpose.msra.mxu0 0.0
        %482 = vmatprep.mubr.f32.mxu0 0.0
        %483 = vmatmul.mubr.f32.gmra.mrb[0].mxu0 %v413
        %v484 = vpop.f32.mrb[0].mxu0
        %v485 = vadd.f32 0.0, %v484
        %v486 = vpop.f32.mrb[0].mxu0
        %487 = vdwg.mxu0
        %v488 = vmul.f32 %v485, 0.25
        %vm489 = vcmask 64512
        %v490 = vsel %vm489, %v488, -inf
        %491 = vmax.xlane.f32.xlu0 %v490
        %v492 = vpop.xlane.xlu0 %491
        %v493 = vsub.f32 %v488, %v492
        %v494 = vmul.f32 %v493, 1.442695
        %v495 = vpow.pop %v494
        %v496 = vsel %vm489, %v495, 0.0
        %497 = vadd.xlane.f32.xlu0 %v496
        %v498 = vpop.xlane.xlu0 %497
        %v499 = vrcp.pop %v498
        %v500 = vmul.f32 %v495, %v499
        %v502 = vsel %vm489, %v500, 0
        %504 = vmatprep.subr.mxu0 0.0
        %505 = vmatpush1.msra.mxu0 %v392
        %506 = vmatprep.subr.mxu0 0.0
        %507 = vmatpush1.msra.mxu0 0.0
        %508 = vmatprep.subr.mxu0 0.0
        %509 = vmatpush1.msra.mxu0 0.0
        %510 = vmatprep.subr.mxu0 0.0
        %511 = vmatpush1.msra.mxu0 0.0
        %512 = vmatprep.subr.mxu0 0.0
        %513 = vmatpush1.msra.mxu0 0.0
        %514 = vmatprep.subr.mxu0 0.0
        %515 = vmatpush1.msra.mxu0 0.0
        %516 = vmatprep.subr.mxu0 0.0
        %517 = vmatpush1.msra.mxu0 0.0
        %518 = vmatprep.subr.mxu0 0.0
        %519 = vmatpush1.msra.mxu0 0.0
        %520 = vmatprep.subr.mxu0 0.0
        %521 = vmatpush1.msra.mxu0 0.0
        %522 = vmatprep.subr.mxu0 0.0
        %523 = vmatpush1.msra.mxu0 0.0
        %524 = vmatprep.subr.mxu0 0.0
        %525 = vmatpush1.msra.mxu0 0.0
        %526 = vmatprep.subr.mxu0 0.0
        %527 = vmatpush1.msra.mxu0 0.0
        %528 = vmatprep.subr.mxu0 0.0
        %529 = vmatpush1.msra.mxu0 0.0
        %530 = vmatprep.subr.mxu0 0.0
        %531 = vmatpush1.msra.mxu0 0.0
        %532 = vmatprep.subr.mxu0 0.0
        %533 = vmatpush1.msra.mxu0 0.0
        %534 = vmatprep.subr.mxu0 0.0
        %535 = vmatpush1.msra.mxu0 0.0
        %536 = vmatprep.subr.mxu0 0.0
        %537 = vmatpush1.msra.mxu0 0.0
        %538 = vmatprep.subr.mxu0 0.0
        %539 = vmatpush1.msra.mxu0 0.0
        %540 = vmatprep.subr.mxu0 0.0
        %541 = vmatpush1.msra.mxu0 0.0
        %542 = vmatprep.subr.mxu0 0.0
        %543 = vmatpush1.msra.mxu0 0.0
        %544 = vmatprep.subr.mxu0 0.0
        %545 = vmatpush1.msra.mxu0 0.0
        %546 = vmatprep.subr.mxu0 0.0
        %547 = vmatpush1.msra.mxu0 0.0
        %548 = vmatprep.subr.mxu0 0.0
        %549 = vmatpush1.msra.mxu0 0.0
        %550 = vmatprep.subr.mxu0 0.0
        %551 = vmatpush1.msra.mxu0 0.0
        %552 = vmatprep.subr.mxu0 0.0
        %553 = vmatpush1.msra.mxu0 0.0
        %554 = vmatprep.subr.mxu0 0.0
        %555 = vmatpush1.msra.mxu0 0.0
        %556 = vmatprep.subr.mxu0 0.0
        %557 = vmatpush1.msra.mxu0 0.0
        %558 = vmatprep.subr.mxu0 0.0
        %559 = vmatpush1.msra.mxu0 0.0
        %560 = vmatprep.subr.mxu0 0.0
        %561 = vmatpush1.msra.mxu0 0.0
        %562 = vmatprep.subr.mxu0 0.0
        %563 = vmatpush1.msra.mxu0 0.0
        %564 = vmatprep.subr.mxu0 0.0
        %565 = vmatpush1.msra.mxu0 0.0
        %566 = vmatprep.subr.mxu0 0.0
        %567 = vmatpush1.msra.mxu0 0.0
        %568 = vmatprep.mubr.f32.mxu0 0.0
        %569 = vmatmul.mubr.f32.gmra.mrb[0].mxu0 %v502
        %v570 = vpop.f32.mrb[0].mxu0
        %v571 = vadd.f32 0.0, %v570
        %v572 = vpop.f32.mrb[0].mxu0
        %573 = vdwg.mxu0
        %574 = vrot.lane.b32.xlu0 %v321, 112
        %v575 = vpop.permute.xlu0 %574
        %576 = vrot.lane.b32.xlu0 %v323, 112
        %v577 = vpop.permute.xlu0 %576
        %v578 = vsel %vm411, %v575, 0
        %v580 = vsel %vm411, %v577, 0
        %582 = vmatprep.subr.mxu0 0.0
        %583 = vmatpush1.xpose.msra.mxu0 %v580
        %584 = vmatprep.subr.mxu0 0.0
        %585 = vmatpush1.xpose.msra.mxu0 0.0
        %586 = vmatprep.subr.mxu0 0.0
        %587 = vmatpush1.xpose.msra.mxu0 0.0
        %588 = vmatprep.subr.mxu0 0.0
        %589 = vmatpush1.xpose.msra.mxu0 0.0
        %590 = vmatprep.subr.mxu0 0.0
        %591 = vmatpush1.xpose.msra.mxu0 0.0
        %592 = vmatprep.subr.mxu0 0.0
        %593 = vmatpush1.xpose.msra.mxu0 0.0
        %594 = vmatprep.subr.mxu0 0.0
        %595 = vmatpush1.xpose.msra.mxu0 0.0
        %596 = vmatprep.subr.mxu0 0.0
        %597 = vmatpush1.xpose.msra.mxu0 0.0
        %598 = vmatprep.subr.mxu0 0.0
        %599 = vmatpush1.xpose.msra.mxu0 0.0
        %600 = vmatprep.subr.mxu0 0.0
        %601 = vmatpush1.xpose.msra.mxu0 0.0
        %602 = vmatprep.subr.mxu0 0.0
        %603 = vmatpush1.xpose.msra.mxu0 0.0
        %604 = vmatprep.subr.mxu0 0.0
        %605 = vmatpush1.xpose.msra.mxu0 0.0
        %606 = vmatprep.subr.mxu0 0.0
        %607 = vmatpush1.xpose.msra.mxu0 0.0
        %608 = vmatprep.subr.mxu0 0.0
        %609 = vmatpush1.xpose.msra.mxu0 0.0
        %610 = vmatprep.subr.mxu0 0.0
        %611 = vmatpush1.xpose.msra.mxu0 0.0
        %612 = vmatprep.subr.mxu0 0.0
        %613 = vmatpush1.xpose.msra.mxu0 0.0
        %614 = vmatprep.subr.mxu0 0.0
        %615 = vmatpush1.xpose.msra.mxu0 0.0
        %616 = vmatprep.subr.mxu0 0.0
        %617 = vmatpush1.xpose.msra.mxu0 0.0
        %618 = vmatprep.subr.mxu0 0.0
        %619 = vmatpush1.xpose.msra.mxu0 0.0
        %620 = vmatprep.subr.mxu0 0.0
        %621 = vmatpush1.xpose.msra.mxu0 0.0
        %622 = vmatprep.subr.mxu0 0.0
        %623 = vmatpush1.xpose.msra.mxu0 0.0
        %624 = vmatprep.subr.mxu0 0.0
        %625 = vmatpush1.xpose.msra.mxu0 0.0
        %626 = vmatprep.subr.mxu0 0.0
        %627 = vmatpush1.xpose.msra.mxu0 0.0
        %628 = vmatprep.subr.mxu0 0.0
        %629 = vmatpush1.xpose.msra.mxu0 0.0
        %630 = vmatprep.subr.mxu0 0.0
        %631 = vmatpush1.xpose.msra.mxu0 0.0
        %632 = vmatprep.subr.mxu0 0.0
        %633 = vmatpush1.xpose.msra.mxu0 0.0
        %634 = vmatprep.subr.mxu0 0.0
        %635 = vmatpush1.xpose.msra.mxu0 0.0
        %636 = vmatprep.subr.mxu0 0.0
        %637 = vmatpush1.xpose.msra.mxu0 0.0
        %638 = vmatprep.subr.mxu0 0.0
        %639 = vmatpush1.xpose.msra.mxu0 0.0
        %640 = vmatprep.subr.mxu0 0.0
        %641 = vmatpush1.xpose.msra.mxu0 0.0
        %642 = vmatprep.subr.mxu0 0.0
        %643 = vmatpush1.xpose.msra.mxu0 0.0
        %644 = vmatprep.subr.mxu0 0.0
        %645 = vmatpush1.xpose.msra.mxu0 0.0
        %646 = vmatprep.mubr.f32.mxu0 0.0
        %647 = vmatmul.mubr.f32.gmra.mrb[0].mxu0 %v578
        %v648 = vpop.f32.mrb[0].mxu0
        %v649 = vadd.f32 0.0, %v648
        %v650 = vpop.f32.mrb[0].mxu0
        %651 = vdwg.mxu0
        %v652 = vmul.f32 %v649, 0.25
        %v653 = vsel %vm489, %v652, -inf
        %654 = vmax.xlane.f32.xlu0 %v653
        %v655 = vpop.xlane.xlu0 %654
        %v656 = vsub.f32 %v652, %v655
        %v657 = vmul.f32 %v656, 1.442695
        %v658 = vpow.pop %v657
        %v659 = vsel %vm489, %v658, 0.0
        %660 = vadd.xlane.f32.xlu0 %v659
        %v661 = vpop.xlane.xlu0 %660
        %v662 = vrcp.pop %v661
        %v663 = vmul.f32 %v658, %v662
        %665 = vrot.lane.b32.xlu0 %v392, 112
        %v666 = vpop.permute.xlu0 %665
        %v669 = vsel %vm489, %v663, 0
        %671 = vmatprep.subr.mxu0 0.0
        %672 = vmatpush1.msra.mxu0 %v666
        %673 = vmatprep.subr.mxu0 0.0
        %674 = vmatpush1.msra.mxu0 0.0
        %675 = vmatprep.subr.mxu0 0.0
        %676 = vmatpush1.msra.mxu0 0.0
        %677 = vmatprep.subr.mxu0 0.0
        %678 = vmatpush1.msra.mxu0 0.0
        %679 = vmatprep.subr.mxu0 0.0
        %680 = vmatpush1.msra.mxu0 0.0
        %681 = vmatprep.subr.mxu0 0.0
        %682 = vmatpush1.msra.mxu0 0.0
        %683 = vmatprep.subr.mxu0 0.0
        %684 = vmatpush1.msra.mxu0 0.0
        %685 = vmatprep.subr.mxu0 0.0
        %686 = vmatpush1.msra.mxu0 0.0
        %687 = vmatprep.subr.mxu0 0.0
        %688 = vmatpush1.msra.mxu0 0.0
        %689 = vmatprep.subr.mxu0 0.0
        %690 = vmatpush1.msra.mxu0 0.0
        %691 = vmatprep.subr.mxu0 0.0
        %692 = vmatpush1.msra.mxu0 0.0
        %693 = vmatprep.subr.mxu0 0.0
        %694 = vmatpush1.msra.mxu0 0.0
        %695 = vmatprep.subr.mxu0 0.0
        %696 = vmatpush1.msra.mxu0 0.0
        %697 = vmatprep.subr.mxu0 0.0
        %698 = vmatpush1.msra.mxu0 0.0
        %699 = vmatprep.subr.mxu0 0.0
        %700 = vmatpush1.msra.mxu0 0.0
        %701 = vmatprep.subr.mxu0 0.0
        %702 = vmatpush1.msra.mxu0 0.0
        %703 = vmatprep.subr.mxu0 0.0
        %704 = vmatpush1.msra.mxu0 0.0
        %705 = vmatprep.subr.mxu0 0.0
        %706 = vmatpush1.msra.mxu0 0.0
        %707 = vmatprep.subr.mxu0 0.0
        %708 = vmatpush1.msra.mxu0 0.0
        %709 = vmatprep.subr.mxu0 0.0
        %710 = vmatpush1.msra.mxu0 0.0
        %711 = vmatprep.subr.mxu0 0.0
        %712 = vmatpush1.msra.mxu0 0.0
        %713 = vmatprep.subr.mxu0 0.0
        %714 = vmatpush1.msra.mxu0 0.0
        %715 = vmatprep.subr.mxu0 0.0
        %716 = vmatpush1.msra.mxu0 0.0
        %717 = vmatprep.subr.mxu0 0.0
        %718 = vmatpush1.msra.mxu0 0.0
        %719 = vmatprep.subr.mxu0 0.0
        %720 = vmatpush1.msra.mxu0 0.0
        %721 = vmatprep.subr.mxu0 0.0
        %722 = vmatpush1.msra.mxu0 0.0
        %723 = vmatprep.subr.mxu0 0.0
        %724 = vmatpush1.msra.mxu0 0.0
        %725 = vmatprep.subr.mxu0 0.0
        %726 = vmatpush1.msra.mxu0 0.0
        %727 = vmatprep.subr.mxu0 0.0
        %728 = vmatpush1.msra.mxu0 0.0
        %729 = vmatprep.subr.mxu0 0.0
        %730 = vmatpush1.msra.mxu0 0.0
        %731 = vmatprep.subr.mxu0 0.0
        %732 = vmatpush1.msra.mxu0 0.0
        %733 = vmatprep.subr.mxu0 0.0
        %734 = vmatpush1.msra.mxu0 0.0
        %735 = vmatprep.mubr.f32.mxu0 0.0
        %736 = vmatmul.mubr.f32.gmra.mrb[0].mxu0 %v669
        %v737 = vpop.f32.mrb[0].mxu0
        %v738 = vadd.f32 0.0, %v737
        %v739 = vpop.f32.mrb[0].mxu0
        %740 = vdwg.mxu0
        %v742 = vsel %vm411, %v738, 0
        %744 = vmatprep.subr.mxu0 0.0
        %745 = vmatpush1.msra.mxu0 %v397
        %746 = vmatprep.subr.mxu0 0.0
        %747 = vmatpush1.msra.mxu0 %v398
        %748 = vmatprep.subr.mxu0 0.0
        %749 = vmatpush1.msra.mxu0 0.0
        %750 = vmatprep.subr.mxu0 0.0
        %751 = vmatpush1.msra.mxu0 0.0
        %752 = vmatprep.subr.mxu0 0.0
        %753 = vmatpush1.msra.mxu0 0.0
        %754 = vmatprep.subr.mxu0 0.0
        %755 = vmatpush1.msra.mxu0 0.0
        %756 = vmatprep.subr.mxu0 0.0
        %757 = vmatpush1.msra.mxu0 0.0
        %758 = vmatprep.subr.mxu0 0.0
        %759 = vmatpush1.msra.mxu0 0.0
        %760 = vmatprep.subr.mxu0 0.0
        %761 = vmatpush1.msra.mxu0 0.0
        %762 = vmatprep.subr.mxu0 0.0
        %763 = vmatpush1.msra.mxu0 0.0
        %764 = vmatprep.subr.mxu0 0.0
        %765 = vmatpush1.msra.mxu0 0.0
        %766 = vmatprep.subr.mxu0 0.0
        %767 = vmatpush1.msra.mxu0 0.0
        %768 = vmatprep.subr.mxu0 0.0
        %769 = vmatpush1.msra.mxu0 0.0
        %770 = vmatprep.subr.mxu0 0.0
        %771 = vmatpush1.msra.mxu0 0.0
        %772 = vmatprep.subr.mxu0 0.0
        %773 = vmatpush1.msra.mxu0 0.0
        %774 = vmatprep.subr.mxu0 0.0
        %775 = vmatpush1.msra.mxu0 0.0
        %776 = vmatprep.subr.mxu0 0.0
        %777 = vmatpush1.msra.mxu0 0.0
        %778 = vmatprep.subr.mxu0 0.0
        %779 = vmatpush1.msra.mxu0 0.0
        %780 = vmatprep.subr.mxu0 0.0
        %781 = vmatpush1.msra.mxu0 0.0
        %782 = vmatprep.subr.mxu0 0.0
        %783 = vmatpush1.msra.mxu0 0.0
        %784 = vmatprep.subr.mxu0 0.0
        %785 = vmatpush1.msra.mxu0 0.0
        %786 = vmatprep.subr.mxu0 0.0
        %787 = vmatpush1.msra.mxu0 0.0
        %788 = vmatprep.subr.mxu0 0.0
        %789 = vmatpush1.msra.mxu0 0.0
        %790 = vmatprep.subr.mxu0 0.0
        %791 = vmatpush1.msra.mxu0 0.0
        %792 = vmatprep.subr.mxu0 0.0
        %793 = vmatpush1.msra.mxu0 0.0
        %794 = vmatprep.subr.mxu0 0.0
        %795 = vmatpush1.msra.mxu0 0.0
        %796 = vmatprep.subr.mxu0 0.0
        %797 = vmatpush1.msra.mxu0 0.0
        %798 = vmatprep.subr.mxu0 0.0
        %799 = vmatpush1.msra.mxu0 0.0
        %800 = vmatprep.subr.mxu0 0.0
        %801 = vmatpush1.msra.mxu0 0.0
        %802 = vmatprep.subr.mxu0 0.0
        %803 = vmatpush1.msra.mxu0 0.0
        %804 = vmatprep.subr.mxu0 0.0
        %805 = vmatpush1.msra.mxu0 0.0
        %806 = vmatprep.subr.mxu0 0.0
        %807 = vmatpush1.msra.mxu0 0.0
        %808 = vmatprep.mubr.f32.mxu0 0.0
        %809 = vmatmul.mubr.f32.gmra.mrb[0].mxu0 %v742
        %v810 = vpop.f32.mrb[0].mxu0
        %v811 = vadd.f32 0.0, %v810
        %v812 = vpop.f32.mrb[0].mxu0
        %813 = vdwg.mxu0
        %v815 = vsel %vm411, %v571, 0
        %817 = vmatprep.subr.mxu0 0.0
        %818 = vmatpush1.msra.mxu0 %v395
        %819 = vmatprep.subr.mxu0 0.0
        %820 = vmatpush1.msra.mxu0 %v396
        %821 = vmatprep.subr.mxu0 0.0
        %822 = vmatpush1.msra.mxu0 0.0
        %823 = vmatprep.subr.mxu0 0.0
        %824 = vmatpush1.msra.mxu0 0.0
        %825 = vmatprep.subr.mxu0 0.0
        %826 = vmatpush1.msra.mxu0 0.0
        %827 = vmatprep.subr.mxu0 0.0
        %828 = vmatpush1.msra.mxu0 0.0
        %829 = vmatprep.subr.mxu0 0.0
        %830 = vmatpush1.msra.mxu0 0.0
        %831 = vmatprep.subr.mxu0 0.0
        %832 = vmatpush1.msra.mxu0 0.0
        %833 = vmatprep.subr.mxu0 0.0
        %834 = vmatpush1.msra.mxu0 0.0
        %835 = vmatprep.subr.mxu0 0.0
        %836 = vmatpush1.msra.mxu0 0.0
        %837 = vmatprep.subr.mxu0 0.0
        %838 = vmatpush1.msra.mxu0 0.0
        %839 = vmatprep.subr.mxu0 0.0
        %840 = vmatpush1.msra.mxu0 0.0
        %841 = vmatprep.subr.mxu0 0.0
        %842 = vmatpush1.msra.mxu0 0.0
        %843 = vmatprep.subr.mxu0 0.0
        %844 = vmatpush1.msra.mxu0 0.0
        %845 = vmatprep.subr.mxu0 0.0
        %846 = vmatpush1.msra.mxu0 0.0
        %847 = vmatprep.subr.mxu0 0.0
        %848 = vmatpush1.msra.mxu0 0.0
        %849 = vmatprep.subr.mxu0 0.0
        %850 = vmatpush1.msra.mxu0 0.0
        %851 = vmatprep.subr.mxu0 0.0
        %852 = vmatpush1.msra.mxu0 0.0
        %853 = vmatprep.subr.mxu0 0.0
        %854 = vmatpush1.msra.mxu0 0.0
        %855 = vmatprep.subr.mxu0 0.0
        %856 = vmatpush1.msra.mxu0 0.0
        %857 = vmatprep.subr.mxu0 0.0
        %858 = vmatpush1.msra.mxu0 0.0
        %859 = vmatprep.subr.mxu0 0.0
        %860 = vmatpush1.msra.mxu0 0.0
        %861 = vmatprep.subr.mxu0 0.0
        %862 = vmatpush1.msra.mxu0 0.0
        %863 = vmatprep.subr.mxu0 0.0
        %864 = vmatpush1.msra.mxu0 0.0
        %865 = vmatprep.subr.mxu0 0.0
        %866 = vmatpush1.msra.mxu0 0.0
        %867 = vmatprep.subr.mxu0 0.0
        %868 = vmatpush1.msra.mxu0 0.0
        %869 = vmatprep.subr.mxu0 0.0
        %870 = vmatpush1.msra.mxu0 0.0
        %871 = vmatprep.subr.mxu0 0.0
        %872 = vmatpush1.msra.mxu0 0.0
        %873 = vmatprep.subr.mxu0 0.0
        %874 = vmatpush1.msra.mxu0 0.0
        %875 = vmatprep.subr.mxu0 0.0
        %876 = vmatpush1.msra.mxu0 0.0
        %877 = vmatprep.subr.mxu0 0.0
        %878 = vmatpush1.msra.mxu0 0.0
        %879 = vmatprep.subr.mxu0 0.0
        %880 = vmatpush1.msra.mxu0 0.0
        %881 = vmatprep.mubr.f32.mxu0 0.0
        %882 = vmatmul.mubr.f32.gmra.mrb[0].mxu0 %v815
        %v883 = vpop.f32.mrb[0].mxu0
        %v884 = vadd.f32 %v811, %v883
        %v885 = vpop.f32.mrb[0].mxu0
        %886 = vdwg.mxu0
        %887 = vrot.lane.b32.xlu0 %v321, 96
        %v888 = vpop.permute.xlu0 %887
        %889 = vrot.lane.b32.xlu0 %v323, 96
        %v890 = vpop.permute.xlu0 %889
        %v891 = vsel %vm411, %v888, 0
        %v893 = vsel %vm411, %v890, 0
        %895 = vmatprep.subr.mxu0 0.0
        %896 = vmatpush1.xpose.msra.mxu0 %v893
        %897 = vmatprep.subr.mxu0 0.0
        %898 = vmatpush1.xpose.msra.mxu0 0.0
        %899 = vmatprep.subr.mxu0 0.0
        %900 = vmatpush1.xpose.msra.mxu0 0.0
        %901 = vmatprep.subr.mxu0 0.0
        %902 = vmatpush1.xpose.msra.mxu0 0.0
        %903 = vmatprep.subr.mxu0 0.0
        %904 = vmatpush1.xpose.msra.mxu0 0.0
        %905 = vmatprep.subr.mxu0 0.0
        %906 = vmatpush1.xpose.msra.mxu0 0.0
        %907 = vmatprep.subr.mxu0 0.0
        %908 = vmatpush1.xpose.msra.mxu0 0.0
        %909 = vmatprep.subr.mxu0 0.0
        %910 = vmatpush1.xpose.msra.mxu0 0.0
        %911 = vmatprep.subr.mxu0 0.0
        %912 = vmatpush1.xpose.msra.mxu0 0.0
        %913 = vmatprep.subr.mxu0 0.0
        %914 = vmatpush1.xpose.msra.mxu0 0.0
        %915 = vmatprep.subr.mxu0 0.0
        %916 = vmatpush1.xpose.msra.mxu0 0.0
        %917 = vmatprep.subr.mxu0 0.0
        %918 = vmatpush1.xpose.msra.mxu0 0.0
        %919 = vmatprep.subr.mxu0 0.0
        %920 = vmatpush1.xpose.msra.mxu0 0.0
        %921 = vmatprep.subr.mxu0 0.0
        %922 = vmatpush1.xpose.msra.mxu0 0.0
        %923 = vmatprep.subr.mxu0 0.0
        %924 = vmatpush1.xpose.msra.mxu0 0.0
        %925 = vmatprep.subr.mxu0 0.0
        %926 = vmatpush1.xpose.msra.mxu0 0.0
        %927 = vmatprep.subr.mxu0 0.0
        %928 = vmatpush1.xpose.msra.mxu0 0.0
        %929 = vmatprep.subr.mxu0 0.0
        %930 = vmatpush1.xpose.msra.mxu0 0.0
        %931 = vmatprep.subr.mxu0 0.0
        %932 = vmatpush1.xpose.msra.mxu0 0.0
        %933 = vmatprep.subr.mxu0 0.0
        %934 = vmatpush1.xpose.msra.mxu0 0.0
        %935 = vmatprep.subr.mxu0 0.0
        %936 = vmatpush1.xpose.msra.mxu0 0.0
        %937 = vmatprep.subr.mxu0 0.0
        %938 = vmatpush1.xpose.msra.mxu0 0.0
        %939 = vmatprep.subr.mxu0 0.0
        %940 = vmatpush1.xpose.msra.mxu0 0.0
        %941 = vmatprep.subr.mxu0 0.0
        %942 = vmatpush1.xpose.msra.mxu0 0.0
        %943 = vmatprep.subr.mxu0 0.0
        %944 = vmatpush1.xpose.msra.mxu0 0.0
        %945 = vmatprep.subr.mxu0 0.0
        %946 = vmatpush1.xpose.msra.mxu0 0.0
        %947 = vmatprep.subr.mxu0 0.0
        %948 = vmatpush1.xpose.msra.mxu0 0.0
        %949 = vmatprep.subr.mxu0 0.0
        %950 = vmatpush1.xpose.msra.mxu0 0.0
        %951 = vmatprep.subr.mxu0 0.0
        %952 = vmatpush1.xpose.msra.mxu0 0.0
        %953 = vmatprep.subr.mxu0 0.0
        %954 = vmatpush1.xpose.msra.mxu0 0.0
        %955 = vmatprep.subr.mxu0 0.0
        %956 = vmatpush1.xpose.msra.mxu0 0.0
        %957 = vmatprep.subr.mxu0 0.0
        %958 = vmatpush1.xpose.msra.mxu0 0.0
        %959 = vmatprep.mubr.f32.mxu0 0.0
        %960 = vmatmul.mubr.f32.gmra.mrb[0].mxu0 %v891
        %v961 = vpop.f32.mrb[0].mxu0
        %v962 = vadd.f32 0.0, %v961
        %v963 = vpop.f32.mrb[0].mxu0
        %964 = vdwg.mxu0
        %v965 = vmul.f32 %v962, 0.25
        %v966 = vsel %vm489, %v965, -inf
        %967 = vmax.xlane.f32.xlu0 %v966
        %v968 = vpop.xlane.xlu0 %967
        %v969 = vsub.f32 %v965, %v968
        %v970 = vmul.f32 %v969, 1.442695
        %v971 = vpow.pop %v970
        %v972 = vsel %vm489, %v971, 0.0
        %973 = vadd.xlane.f32.xlu0 %v972
        %v974 = vpop.xlane.xlu0 %973
        %v975 = vrcp.pop %v974
        %v976 = vmul.f32 %v971, %v975
        %977 = vrot.lane.b32.xlu0 %v392, 96
        %v978 = vpop.permute.xlu0 %977
        %v981 = vsel %vm489, %v976, 0
        %983 = vmatprep.subr.mxu0 0.0
        %984 = vmatpush1.msra.mxu0 %v978
        %985 = vmatprep.subr.mxu0 0.0
        %986 = vmatpush1.msra.mxu0 0.0
        %987 = vmatprep.subr.mxu0 0.0
        %988 = vmatpush1.msra.mxu0 0.0
        %989 = vmatprep.subr.mxu0 0.0
        %990 = vmatpush1.msra.mxu0 0.0
        %991 = vmatprep.subr.mxu0 0.0
        %992 = vmatpush1.msra.mxu0 0.0
        %993 = vmatprep.subr.mxu0 0.0
        %994 = vmatpush1.msra.mxu0 0.0
        %995 = vmatprep.subr.mxu0 0.0
        %996 = vmatpush1.msra.mxu0 0.0
        %997 = vmatprep.subr.mxu0 0.0
        %998 = vmatpush1.msra.mxu0 0.0
        %999 = vmatprep.subr.mxu0 0.0
        %1000 = vmatpush1.msra.mxu0 0.0
        %1001 = vmatprep.subr.mxu0 0.0
        %1002 = vmatpush1.msra.mxu0 0.0
        %1003 = vmatprep.subr.mxu0 0.0
        %1004 = vmatpush1.msra.mxu0 0.0
        %1005 = vmatprep.subr.mxu0 0.0
        %1006 = vmatpush1.msra.mxu0 0.0
        %1007 = vmatprep.subr.mxu0 0.0
        %1008 = vmatpush1.msra.mxu0 0.0
        %1009 = vmatprep.subr.mxu0 0.0
        %1010 = vmatpush1.msra.mxu0 0.0
        %1011 = vmatprep.subr.mxu0 0.0
        %1012 = vmatpush1.msra.mxu0 0.0
        %1013 = vmatprep.subr.mxu0 0.0
        %1014 = vmatpush1.msra.mxu0 0.0
        %1015 = vmatprep.subr.mxu0 0.0
        %1016 = vmatpush1.msra.mxu0 0.0
        %1017 = vmatprep.subr.mxu0 0.0
        %1018 = vmatpush1.msra.mxu0 0.0
        %1019 = vmatprep.subr.mxu0 0.0
        %1020 = vmatpush1.msra.mxu0 0.0
        %1021 = vmatprep.subr.mxu0 0.0
        %1022 = vmatpush1.msra.mxu0 0.0
        %1023 = vmatprep.subr.mxu0 0.0
        %1024 = vmatpush1.msra.mxu0 0.0
        %1025 = vmatprep.subr.mxu0 0.0
        %1026 = vmatpush1.msra.mxu0 0.0
        %1027 = vmatprep.subr.mxu0 0.0
        %1028 = vmatpush1.msra.mxu0 0.0
        %1029 = vmatprep.subr.mxu0 0.0
        %1030 = vmatpush1.msra.mxu0 0.0
        %1031 = vmatprep.subr.mxu0 0.0
        %1032 = vmatpush1.msra.mxu0 0.0
        %1033 = vmatprep.subr.mxu0 0.0
        %1034 = vmatpush1.msra.mxu0 0.0
        %1035 = vmatprep.subr.mxu0 0.0
        %1036 = vmatpush1.msra.mxu0 0.0
        %1037 = vmatprep.subr.mxu0 0.0
        %1038 = vmatpush1.msra.mxu0 0.0
        %1039 = vmatprep.subr.mxu0 0.0
        %1040 = vmatpush1.msra.mxu0 0.0
        %1041 = vmatprep.subr.mxu0 0.0
        %1042 = vmatpush1.msra.mxu0 0.0
        %1043 = vmatprep.subr.mxu0 0.0
        %1044 = vmatpush1.msra.mxu0 0.0
        %1045 = vmatprep.subr.mxu0 0.0
        %1046 = vmatpush1.msra.mxu0 0.0
        %1047 = vmatprep.mubr.f32.mxu0 0.0
        %1048 = vmatmul.mubr.f32.gmra.mrb[0].mxu0 %v981
        %v1049 = vpop.f32.mrb[0].mxu0
        %v1050 = vadd.f32 0.0, %v1049
        %v1051 = vpop.f32.mrb[0].mxu0
        %1052 = vdwg.mxu0
        %v1054 = vsel %vm411, %v1050, 0
        %1056 = vmatprep.subr.mxu0 0.0
        %1057 = vmatpush1.msra.mxu0 %v399
        %1058 = vmatprep.subr.mxu0 0.0
        %1059 = vmatpush1.msra.mxu0 %v400
        %1060 = vmatprep.subr.mxu0 0.0
        %1061 = vmatpush1.msra.mxu0 0.0
        %1062 = vmatprep.subr.mxu0 0.0
        %1063 = vmatpush1.msra.mxu0 0.0
        %1064 = vmatprep.subr.mxu0 0.0
        %1065 = vmatpush1.msra.mxu0 0.0
        %1066 = vmatprep.subr.mxu0 0.0
        %1067 = vmatpush1.msra.mxu0 0.0
        %1068 = vmatprep.subr.mxu0 0.0
        %1069 = vmatpush1.msra.mxu0 0.0
        %1070 = vmatprep.subr.mxu0 0.0
        %1071 = vmatpush1.msra.mxu0 0.0
        %1072 = vmatprep.subr.mxu0 0.0
        %1073 = vmatpush1.msra.mxu0 0.0
        %1074 = vmatprep.subr.mxu0 0.0
        %1075 = vmatpush1.msra.mxu0 0.0
        %1076 = vmatprep.subr.mxu0 0.0
        %1077 = vmatpush1.msra.mxu0 0.0
        %1078 = vmatprep.subr.mxu0 0.0
        %1079 = vmatpush1.msra.mxu0 0.0
        %1080 = vmatprep.subr.mxu0 0.0
        %1081 = vmatpush1.msra.mxu0 0.0
        %1082 = vmatprep.subr.mxu0 0.0
        %1083 = vmatpush1.msra.mxu0 0.0
        %1084 = vmatprep.subr.mxu0 0.0
        %1085 = vmatpush1.msra.mxu0 0.0
        %1086 = vmatprep.subr.mxu0 0.0
        %1087 = vmatpush1.msra.mxu0 0.0
        %1088 = vmatprep.subr.mxu0 0.0
        %1089 = vmatpush1.msra.mxu0 0.0
        %1090 = vmatprep.subr.mxu0 0.0
        %1091 = vmatpush1.msra.mxu0 0.0
        %1092 = vmatprep.subr.mxu0 0.0
        %1093 = vmatpush1.msra.mxu0 0.0
        %1094 = vmatprep.subr.mxu0 0.0
        %1095 = vmatpush1.msra.mxu0 0.0
        %1096 = vmatprep.subr.mxu0 0.0
        %1097 = vmatpush1.msra.mxu0 0.0
        %1098 = vmatprep.subr.mxu0 0.0
        %1099 = vmatpush1.msra.mxu0 0.0
        %1100 = vmatprep.subr.mxu0 0.0
        %1101 = vmatpush1.msra.mxu0 0.0
        %1102 = vmatprep.subr.mxu0 0.0
        %1103 = vmatpush1.msra.mxu0 0.0
        %1104 = vmatprep.subr.mxu0 0.0
        %1105 = vmatpush1.msra.mxu0 0.0
        %1106 = vmatprep.subr.mxu0 0.0
        %1107 = vmatpush1.msra.mxu0 0.0
        %1108 = vmatprep.subr.mxu0 0.0
        %1109 = vmatpush1.msra.mxu0 0.0
        %1110 = vmatprep.subr.mxu0 0.0
        %1111 = vmatpush1.msra.mxu0 0.0
        %1112 = vmatprep.subr.mxu0 0.0
        %1113 = vmatpush1.msra.mxu0 0.0
        %1114 = vmatprep.subr.mxu0 0.0
        %1115 = vmatpush1.msra.mxu0 0.0
        %1116 = vmatprep.subr.mxu0 0.0
        %1117 = vmatpush1.msra.mxu0 0.0
        %1118 = vmatprep.subr.mxu0 0.0
        %1119 = vmatpush1.msra.mxu0 0.0
        %1120 = vmatprep.mubr.f32.mxu0 0.0
        %1121 = vmatmul.mubr.f32.gmra.mrb[0].mxu0 %v1054
        %v1122 = vpop.f32.mrb[0].mxu0
        %v1123 = vadd.f32 0.0, %v1122
        %v1124 = vpop.f32.mrb[0].mxu0
        %1125 = vdwg.mxu0
        %v1126 = vadd.f32 %v884, %v1123
        %1127 = vrot.lane.b32.xlu0 %v321, 80
        %v1128 = vpop.permute.xlu0 %1127
        %1129 = vrot.lane.b32.xlu0 %v323, 80
        %v1130 = vpop.permute.xlu0 %1129
        %v1131 = vsel %vm411, %v1128, 0
        %v1133 = vsel %vm411, %v1130, 0
        %1135 = vmatprep.subr.mxu0 0.0
        %1136 = vmatpush1.xpose.msra.mxu0 %v1133
        %1137 = vmatprep.subr.mxu0 0.0
        %1138 = vmatpush1.xpose.msra.mxu0 0.0
        %1139 = vmatprep.subr.mxu0 0.0
        %1140 = vmatpush1.xpose.msra.mxu0 0.0
        %1141 = vmatprep.subr.mxu0 0.0
        %1142 = vmatpush1.xpose.msra.mxu0 0.0
        %1143 = vmatprep.subr.mxu0 0.0
        %1144 = vmatpush1.xpose.msra.mxu0 0.0
        %1145 = vmatprep.subr.mxu0 0.0
        %1146 = vmatpush1.xpose.msra.mxu0 0.0
        %1147 = vmatprep.subr.mxu0 0.0
        %1148 = vmatpush1.xpose.msra.mxu0 0.0
        %1149 = vmatprep.subr.mxu0 0.0
        %1150 = vmatpush1.xpose.msra.mxu0 0.0
        %1151 = vmatprep.subr.mxu0 0.0
        %1152 = vmatpush1.xpose.msra.mxu0 0.0
        %1153 = vmatprep.subr.mxu0 0.0
        %1154 = vmatpush1.xpose.msra.mxu0 0.0
        %1155 = vmatprep.subr.mxu0 0.0
        %1156 = vmatpush1.xpose.msra.mxu0 0.0
        %1157 = vmatprep.subr.mxu0 0.0
        %1158 = vmatpush1.xpose.msra.mxu0 0.0
        %1159 = vmatprep.subr.mxu0 0.0
        %1160 = vmatpush1.xpose.msra.mxu0 0.0
        %1161 = vmatprep.subr.mxu0 0.0
        %1162 = vmatpush1.xpose.msra.mxu0 0.0
        %1163 = vmatprep.subr.mxu0 0.0
        %1164 = vmatpush1.xpose.msra.mxu0 0.0
        %1165 = vmatprep.subr.mxu0 0.0
        %1166 = vmatpush1.xpose.msra.mxu0 0.0
        %1167 = vmatprep.subr.mxu0 0.0
        %1168 = vmatpush1.xpose.msra.mxu0 0.0
        %1169 = vmatprep.subr.mxu0 0.0
        %1170 = vmatpush1.xpose.msra.mxu0 0.0
        %1171 = vmatprep.subr.mxu0 0.0
        %1172 = vmatpush1.xpose.msra.mxu0 0.0
        %1173 = vmatprep.subr.mxu0 0.0
        %1174 = vmatpush1.xpose.msra.mxu0 0.0
        %1175 = vmatprep.subr.mxu0 0.0
        %1176 = vmatpush1.xpose.msra.mxu0 0.0
        %1177 = vmatprep.subr.mxu0 0.0
        %1178 = vmatpush1.xpose.msra.mxu0 0.0
        %1179 = vmatprep.subr.mxu0 0.0
        %1180 = vmatpush1.xpose.msra.mxu0 0.0
        %1181 = vmatprep.subr.mxu0 0.0
        %1182 = vmatpush1.xpose.msra.mxu0 0.0
        %1183 = vmatprep.subr.mxu0 0.0
        %1184 = vmatpush1.xpose.msra.mxu0 0.0
        %1185 = vmatprep.subr.mxu0 0.0
        %1186 = vmatpush1.xpose.msra.mxu0 0.0
        %1187 = vmatprep.subr.mxu0 0.0
        %1188 = vmatpush1.xpose.msra.mxu0 0.0
        %1189 = vmatprep.subr.mxu0 0.0
        %1190 = vmatpush1.xpose.msra.mxu0 0.0
        %1191 = vmatprep.subr.mxu0 0.0
        %1192 = vmatpush1.xpose.msra.mxu0 0.0
        %1193 = vmatprep.subr.mxu0 0.0
        %1194 = vmatpush1.xpose.msra.mxu0 0.0
        %1195 = vmatprep.subr.mxu0 0.0
        %1196 = vmatpush1.xpose.msra.mxu0 0.0
        %1197 = vmatprep.subr.mxu0 0.0
        %1198 = vmatpush1.xpose.msra.mxu0 0.0
        %1199 = vmatprep.mubr.f32.mxu0 0.0
        %1200 = vmatmul.mubr.f32.gmra.mrb[0].mxu0 %v1131
        %v1201 = vpop.f32.mrb[0].mxu0
        %v1202 = vadd.f32 0.0, %v1201
        %v1203 = vpop.f32.mrb[0].mxu0
        %1204 = vdwg.mxu0
        %v1205 = vmul.f32 %v1202, 0.25
        %v1206 = vsel %vm489, %v1205, -inf
        %1207 = vmax.xlane.f32.xlu0 %v1206
        %v1208 = vpop.xlane.xlu0 %1207
        %v1209 = vsub.f32 %v1205, %v1208
        %v1210 = vmul.f32 %v1209, 1.442695
        %v1211 = vpow.pop %v1210
        %v1212 = vsel %vm489, %v1211, 0.0
        %1213 = vadd.xlane.f32.xlu0 %v1212
        %v1214 = vpop.xlane.xlu0 %1213
        %v1215 = vrcp.pop %v1214
        %v1216 = vmul.f32 %v1211, %v1215
        %1217 = vrot.lane.b32.xlu0 %v392, 80
        %v1218 = vpop.permute.xlu0 %1217
        %v1221 = vsel %vm489, %v1216, 0
        %1223 = vmatprep.subr.mxu0 0.0
        %1224 = vmatpush1.msra.mxu0 %v1218
        %1225 = vmatprep.subr.mxu0 0.0
        %1226 = vmatpush1.msra.mxu0 0.0
        %1227 = vmatprep.subr.mxu0 0.0
        %1228 = vmatpush1.msra.mxu0 0.0
        %1229 = vmatprep.subr.mxu0 0.0
        %1230 = vmatpush1.msra.mxu0 0.0
        %1231 = vmatprep.subr.mxu0 0.0
        %1232 = vmatpush1.msra.mxu0 0.0
        %1233 = vmatprep.subr.mxu0 0.0
        %1234 = vmatpush1.msra.mxu0 0.0
        %1235 = vmatprep.subr.mxu0 0.0
        %1236 = vmatpush1.msra.mxu0 0.0
        %1237 = vmatprep.subr.mxu0 0.0
        %1238 = vmatpush1.msra.mxu0 0.0
        %1239 = vmatprep.subr.mxu0 0.0
        %1240 = vmatpush1.msra.mxu0 0.0
        %1241 = vmatprep.subr.mxu0 0.0
        %1242 = vmatpush1.msra.mxu0 0.0
        %1243 = vmatprep.subr.mxu0 0.0
        %1244 = vmatpush1.msra.mxu0 0.0
        %1245 = vmatprep.subr.mxu0 0.0
        %1246 = vmatpush1.msra.mxu0 0.0
        %1247 = vmatprep.subr.mxu0 0.0
        %1248 = vmatpush1.msra.mxu0 0.0
        %1249 = vmatprep.subr.mxu0 0.0
        %1250 = vmatpush1.msra.mxu0 0.0
        %1251 = vmatprep.subr.mxu0 0.0
        %1252 = vmatpush1.msra.mxu0 0.0
        %1253 = vmatprep.subr.mxu0 0.0
        %1254 = vmatpush1.msra.mxu0 0.0
        %1255 = vmatprep.subr.mxu0 0.0
        %1256 = vmatpush1.msra.mxu0 0.0
        %1257 = vmatprep.subr.mxu0 0.0
        %1258 = vmatpush1.msra.mxu0 0.0
        %1259 = vmatprep.subr.mxu0 0.0
        %1260 = vmatpush1.msra.mxu0 0.0
        %1261 = vmatprep.subr.mxu0 0.0
        %1262 = vmatpush1.msra.mxu0 0.0
        %1263 = vmatprep.subr.mxu0 0.0
        %1264 = vmatpush1.msra.mxu0 0.0
        %1265 = vmatprep.subr.mxu0 0.0
        %1266 = vmatpush1.msra.mxu0 0.0
        %1267 = vmatprep.subr.mxu0 0.0
        %1268 = vmatpush1.msra.mxu0 0.0
        %1269 = vmatprep.subr.mxu0 0.0
        %1270 = vmatpush1.msra.mxu0 0.0
        %1271 = vmatprep.subr.mxu0 0.0
        %1272 = vmatpush1.msra.mxu0 0.0
        %1273 = vmatprep.subr.mxu0 0.0
        %1274 = vmatpush1.msra.mxu0 0.0
        %1275 = vmatprep.subr.mxu0 0.0
        %1276 = vmatpush1.msra.mxu0 0.0
        %1277 = vmatprep.subr.mxu0 0.0
        %1278 = vmatpush1.msra.mxu0 0.0
        %1279 = vmatprep.subr.mxu0 0.0
        %1280 = vmatpush1.msra.mxu0 0.0
        %1281 = vmatprep.subr.mxu0 0.0
        %1282 = vmatpush1.msra.mxu0 0.0
        %1283 = vmatprep.subr.mxu0 0.0
        %1284 = vmatpush1.msra.mxu0 0.0
        %1285 = vmatprep.subr.mxu0 0.0
        %1286 = vmatpush1.msra.mxu0 0.0
        %1287 = vmatprep.mubr.f32.mxu0 0.0
        %1288 = vmatmul.mubr.f32.gmra.mrb[0].mxu0 %v1221
        %v1289 = vpop.f32.mrb[0].mxu0
        %v1290 = vadd.f32 0.0, %v1289
        %v1291 = vpop.f32.mrb[0].mxu0
        %1292 = vdwg.mxu0
        %v1294 = vsel %vm411, %v1290, 0
        %1296 = vmatprep.subr.mxu0 0.0
        %1297 = vmatpush1.msra.mxu0 %v401
        %1298 = vmatprep.subr.mxu0 0.0
        %1299 = vmatpush1.msra.mxu0 %v402
        %1300 = vmatprep.subr.mxu0 0.0
        %1301 = vmatpush1.msra.mxu0 0.0
        %1302 = vmatprep.subr.mxu0 0.0
        %1303 = vmatpush1.msra.mxu0 0.0
        %1304 = vmatprep.subr.mxu0 0.0
        %1305 = vmatpush1.msra.mxu0 0.0
        %1306 = vmatprep.subr.mxu0 0.0
        %1307 = vmatpush1.msra.mxu0 0.0
        %1308 = vmatprep.subr.mxu0 0.0
        %1309 = vmatpush1.msra.mxu0 0.0
        %1310 = vmatprep.subr.mxu0 0.0
        %1311 = vmatpush1.msra.mxu0 0.0
        %1312 = vmatprep.subr.mxu0 0.0
        %1313 = vmatpush1.msra.mxu0 0.0
        %1314 = vmatprep.subr.mxu0 0.0
        %1315 = vmatpush1.msra.mxu0 0.0
        %1316 = vmatprep.subr.mxu0 0.0
        %1317 = vmatpush1.msra.mxu0 0.0
        %1318 = vmatprep.subr.mxu0 0.0
        %1319 = vmatpush1.msra.mxu0 0.0
        %1320 = vmatprep.subr.mxu0 0.0
        %1321 = vmatpush1.msra.mxu0 0.0
        %1322 = vmatprep.subr.mxu0 0.0
        %1323 = vmatpush1.msra.mxu0 0.0
        %1324 = vmatprep.subr.mxu0 0.0
        %1325 = vmatpush1.msra.mxu0 0.0
        %1326 = vmatprep.subr.mxu0 0.0
        %1327 = vmatpush1.msra.mxu0 0.0
        %1328 = vmatprep.subr.mxu0 0.0
        %1329 = vmatpush1.msra.mxu0 0.0
        %1330 = vmatprep.subr.mxu0 0.0
        %1331 = vmatpush1.msra.mxu0 0.0
        %1332 = vmatprep.subr.mxu0 0.0
        %1333 = vmatpush1.msra.mxu0 0.0
        %1334 = vmatprep.subr.mxu0 0.0
        %1335 = vmatpush1.msra.mxu0 0.0
        %1336 = vmatprep.subr.mxu0 0.0
        %1337 = vmatpush1.msra.mxu0 0.0
        %1338 = vmatprep.subr.mxu0 0.0
        %1339 = vmatpush1.msra.mxu0 0.0
        %1340 = vmatprep.subr.mxu0 0.0
        %1341 = vmatpush1.msra.mxu0 0.0
        %1342 = vmatprep.subr.mxu0 0.0
        %1343 = vmatpush1.msra.mxu0 0.0
        %1344 = vmatprep.subr.mxu0 0.0
        %1345 = vmatpush1.msra.mxu0 0.0
        %1346 = vmatprep.subr.mxu0 0.0
        %1347 = vmatpush1.msra.mxu0 0.0
        %1348 = vmatprep.subr.mxu0 0.0
        %1349 = vmatpush1.msra.mxu0 0.0
        %1350 = vmatprep.subr.mxu0 0.0
        %1351 = vmatpush1.msra.mxu0 0.0
        %1352 = vmatprep.subr.mxu0 0.0
        %1353 = vmatpush1.msra.mxu0 0.0
        %1354 = vmatprep.subr.mxu0 0.0
        %1355 = vmatpush1.msra.mxu0 0.0
        %1356 = vmatprep.subr.mxu0 0.0
        %1357 = vmatpush1.msra.mxu0 0.0
        %1358 = vmatprep.subr.mxu0 0.0
        %1359 = vmatpush1.msra.mxu0 0.0
        %1360 = vmatprep.mubr.f32.mxu0 0.0
        %1361 = vmatmul.mubr.f32.gmra.mrb[0].mxu0 %v1294
        %v1362 = vpop.f32.mrb[0].mxu0
        %v1363 = vadd.f32 0.0, %v1362
        %v1364 = vpop.f32.mrb[0].mxu0
        %1365 = vdwg.mxu0
        %v1366 = vadd.f32 %v1126, %v1363
        %1367 = vrot.lane.b32.xlu0 %v321, 64
        %v1368 = vpop.permute.xlu0 %1367
        %1369 = vrot.lane.b32.xlu0 %v323, 64
        %v1370 = vpop.permute.xlu0 %1369
        %v1371 = vsel %vm411, %v1368, 0
        %v1373 = vsel %vm411, %v1370, 0
        %1375 = vmatprep.subr.mxu0 0.0
        %1376 = vmatpush1.xpose.msra.mxu0 %v1373
        %1377 = vmatprep.subr.mxu0 0.0
        %1378 = vmatpush1.xpose.msra.mxu0 0.0
        %1379 = vmatprep.subr.mxu0 0.0
        %1380 = vmatpush1.xpose.msra.mxu0 0.0
        %1381 = vmatprep.subr.mxu0 0.0
        %1382 = vmatpush1.xpose.msra.mxu0 0.0
        %1383 = vmatprep.subr.mxu0 0.0
        %1384 = vmatpush1.xpose.msra.mxu0 0.0
        %1385 = vmatprep.subr.mxu0 0.0
        %1386 = vmatpush1.xpose.msra.mxu0 0.0
        %1387 = vmatprep.subr.mxu0 0.0
        %1388 = vmatpush1.xpose.msra.mxu0 0.0
        %1389 = vmatprep.subr.mxu0 0.0
        %1390 = vmatpush1.xpose.msra.mxu0 0.0
        %1391 = vmatprep.subr.mxu0 0.0
        %1392 = vmatpush1.xpose.msra.mxu0 0.0
        %1393 = vmatprep.subr.mxu0 0.0
        %1394 = vmatpush1.xpose.msra.mxu0 0.0
        %1395 = vmatprep.subr.mxu0 0.0
        %1396 = vmatpush1.xpose.msra.mxu0 0.0
        %1397 = vmatprep.subr.mxu0 0.0
        %1398 = vmatpush1.xpose.msra.mxu0 0.0
        %1399 = vmatprep.subr.mxu0 0.0
        %1400 = vmatpush1.xpose.msra.mxu0 0.0
        %1401 = vmatprep.subr.mxu0 0.0
        %1402 = vmatpush1.xpose.msra.mxu0 0.0
        %1403 = vmatprep.subr.mxu0 0.0
        %1404 = vmatpush1.xpose.msra.mxu0 0.0
        %1405 = vmatprep.subr.mxu0 0.0
        %1406 = vmatpush1.xpose.msra.mxu0 0.0
        %1407 = vmatprep.subr.mxu0 0.0
        %1408 = vmatpush1.xpose.msra.mxu0 0.0
        %1409 = vmatprep.subr.mxu0 0.0
        %1410 = vmatpush1.xpose.msra.mxu0 0.0
        %1411 = vmatprep.subr.mxu0 0.0
        %1412 = vmatpush1.xpose.msra.mxu0 0.0
        %1413 = vmatprep.subr.mxu0 0.0
        %1414 = vmatpush1.xpose.msra.mxu0 0.0
        %1415 = vmatprep.subr.mxu0 0.0
        %1416 = vmatpush1.xpose.msra.mxu0 0.0
        %1417 = vmatprep.subr.mxu0 0.0
        %1418 = vmatpush1.xpose.msra.mxu0 0.0
        %1419 = vmatprep.subr.mxu0 0.0
        %1420 = vmatpush1.xpose.msra.mxu0 0.0
        %1421 = vmatprep.subr.mxu0 0.0
        %1422 = vmatpush1.xpose.msra.mxu0 0.0
        %1423 = vmatprep.subr.mxu0 0.0
        %1424 = vmatpush1.xpose.msra.mxu0 0.0
        %1425 = vmatprep.subr.mxu0 0.0
        %1426 = vmatpush1.xpose.msra.mxu0 0.0
        %1427 = vmatprep.subr.mxu0 0.0
        %1428 = vmatpush1.xpose.msra.mxu0 0.0
        %1429 = vmatprep.subr.mxu0 0.0
        %1430 = vmatpush1.xpose.msra.mxu0 0.0
        %1431 = vmatprep.subr.mxu0 0.0
        %1432 = vmatpush1.xpose.msra.mxu0 0.0
        %1433 = vmatprep.subr.mxu0 0.0
        %1434 = vmatpush1.xpose.msra.mxu0 0.0
        %1435 = vmatprep.subr.mxu0 0.0
        %1436 = vmatpush1.xpose.msra.mxu0 0.0
        %1437 = vmatprep.subr.mxu0 0.0
        %1438 = vmatpush1.xpose.msra.mxu0 0.0
        %1439 = vmatprep.mubr.f32.mxu0 0.0
        %1440 = vmatmul.mubr.f32.gmra.mrb[0].mxu0 %v1371
        %v1441 = vpop.f32.mrb[0].mxu0
        %v1442 = vadd.f32 0.0, %v1441
        %v1443 = vpop.f32.mrb[0].mxu0
        %1444 = vdwg.mxu0
        %v1445 = vmul.f32 %v1442, 0.25
        %v1446 = vsel %vm489, %v1445, -inf
        %1447 = vmax.xlane.f32.xlu0 %v1446
        %v1448 = vpop.xlane.xlu0 %1447
        %v1449 = vsub.f32 %v1445, %v1448
        %v1450 = vmul.f32 %v1449, 1.442695
        %v1451 = vpow.pop %v1450
        %v1452 = vsel %vm489, %v1451, 0.0
        %1453 = vadd.xlane.f32.xlu0 %v1452
        %v1454 = vpop.xlane.xlu0 %1453
        %v1455 = vrcp.pop %v1454
        %v1456 = vmul.f32 %v1451, %v1455
        %1457 = vrot.lane.b32.xlu0 %v392, 64
        %v1458 = vpop.permute.xlu0 %1457
        %v1461 = vsel %vm489, %v1456, 0
        %1463 = vmatprep.subr.mxu0 0.0
        %1464 = vmatpush1.msra.mxu0 %v1458
        %1465 = vmatprep.subr.mxu0 0.0
        %1466 = vmatpush1.msra.mxu0 0.0
        %1467 = vmatprep.subr.mxu0 0.0
        %1468 = vmatpush1.msra.mxu0 0.0
        %1469 = vmatprep.subr.mxu0 0.0
        %1470 = vmatpush1.msra.mxu0 0.0
        %1471 = vmatprep.subr.mxu0 0.0
        %1472 = vmatpush1.msra.mxu0 0.0
        %1473 = vmatprep.subr.mxu0 0.0
        %1474 = vmatpush1.msra.mxu0 0.0
        %1475 = vmatprep.subr.mxu0 0.0
        %1476 = vmatpush1.msra.mxu0 0.0
        %1477 = vmatprep.subr.mxu0 0.0
        %1478 = vmatpush1.msra.mxu0 0.0
        %1479 = vmatprep.subr.mxu0 0.0
        %1480 = vmatpush1.msra.mxu0 0.0
        %1481 = vmatprep.subr.mxu0 0.0
        %1482 = vmatpush1.msra.mxu0 0.0
        %1483 = vmatprep.subr.mxu0 0.0
        %1484 = vmatpush1.msra.mxu0 0.0
        %1485 = vmatprep.subr.mxu0 0.0
        %1486 = vmatpush1.msra.mxu0 0.0
        %1487 = vmatprep.subr.mxu0 0.0
        %1488 = vmatpush1.msra.mxu0 0.0
        %1489 = vmatprep.subr.mxu0 0.0
        %1490 = vmatpush1.msra.mxu0 0.0
        %1491 = vmatprep.subr.mxu0 0.0
        %1492 = vmatpush1.msra.mxu0 0.0
        %1493 = vmatprep.subr.mxu0 0.0
        %1494 = vmatpush1.msra.mxu0 0.0
        %1495 = vmatprep.subr.mxu0 0.0
        %1496 = vmatpush1.msra.mxu0 0.0
        %1497 = vmatprep.subr.mxu0 0.0
        %1498 = vmatpush1.msra.mxu0 0.0
        %1499 = vmatprep.subr.mxu0 0.0
        %1500 = vmatpush1.msra.mxu0 0.0
        %1501 = vmatprep.subr.mxu0 0.0
        %1502 = vmatpush1.msra.mxu0 0.0
        %1503 = vmatprep.subr.mxu0 0.0
        %1504 = vmatpush1.msra.mxu0 0.0
        %1505 = vmatprep.subr.mxu0 0.0
        %1506 = vmatpush1.msra.mxu0 0.0
        %1507 = vmatprep.subr.mxu0 0.0
        %1508 = vmatpush1.msra.mxu0 0.0
        %1509 = vmatprep.subr.mxu0 0.0
        %1510 = vmatpush1.msra.mxu0 0.0
        %1511 = vmatprep.subr.mxu0 0.0
        %1512 = vmatpush1.msra.mxu0 0.0
        %1513 = vmatprep.subr.mxu0 0.0
        %1514 = vmatpush1.msra.mxu0 0.0
        %1515 = vmatprep.subr.mxu0 0.0
        %1516 = vmatpush1.msra.mxu0 0.0
        %1517 = vmatprep.subr.mxu0 0.0
        %1518 = vmatpush1.msra.mxu0 0.0
        %1519 = vmatprep.subr.mxu0 0.0
        %1520 = vmatpush1.msra.mxu0 0.0
        %1521 = vmatprep.subr.mxu0 0.0
        %1522 = vmatpush1.msra.mxu0 0.0
        %1523 = vmatprep.subr.mxu0 0.0
        %1524 = vmatpush1.msra.mxu0 0.0
        %1525 = vmatprep.subr.mxu0 0.0
        %1526 = vmatpush1.msra.mxu0 0.0
        %1527 = vmatprep.mubr.f32.mxu0 0.0
        %1528 = vmatmul.mubr.f32.gmra.mrb[0].mxu0 %v1461
        %v1529 = vpop.f32.mrb[0].mxu0
        %v1530 = vadd.f32 0.0, %v1529
        %v1531 = vpop.f32.mrb[0].mxu0
        %1532 = vdwg.mxu0
        %v1534 = vsel %vm411, %v1530, 0
        %1536 = vmatprep.subr.mxu0 0.0
        %1537 = vmatpush1.msra.mxu0 %v403
        %1538 = vmatprep.subr.mxu0 0.0
        %1539 = vmatpush1.msra.mxu0 %v404
        %1540 = vmatprep.subr.mxu0 0.0
        %1541 = vmatpush1.msra.mxu0 0.0
        %1542 = vmatprep.subr.mxu0 0.0
        %1543 = vmatpush1.msra.mxu0 0.0
        %1544 = vmatprep.subr.mxu0 0.0
        %1545 = vmatpush1.msra.mxu0 0.0
        %1546 = vmatprep.subr.mxu0 0.0
        %1547 = vmatpush1.msra.mxu0 0.0
        %1548 = vmatprep.subr.mxu0 0.0
        %1549 = vmatpush1.msra.mxu0 0.0
        %1550 = vmatprep.subr.mxu0 0.0
        %1551 = vmatpush1.msra.mxu0 0.0
        %1552 = vmatprep.subr.mxu0 0.0
        %1553 = vmatpush1.msra.mxu0 0.0
        %1554 = vmatprep.subr.mxu0 0.0
        %1555 = vmatpush1.msra.mxu0 0.0
        %1556 = vmatprep.subr.mxu0 0.0
        %1557 = vmatpush1.msra.mxu0 0.0
        %1558 = vmatprep.subr.mxu0 0.0
        %1559 = vmatpush1.msra.mxu0 0.0
        %1560 = vmatprep.subr.mxu0 0.0
        %1561 = vmatpush1.msra.mxu0 0.0
        %1562 = vmatprep.subr.mxu0 0.0
        %1563 = vmatpush1.msra.mxu0 0.0
        %1564 = vmatprep.subr.mxu0 0.0
        %1565 = vmatpush1.msra.mxu0 0.0
        %1566 = vmatprep.subr.mxu0 0.0
        %1567 = vmatpush1.msra.mxu0 0.0
        %1568 = vmatprep.subr.mxu0 0.0
        %1569 = vmatpush1.msra.mxu0 0.0
        %1570 = vmatprep.subr.mxu0 0.0
        %1571 = vmatpush1.msra.mxu0 0.0
        %1572 = vmatprep.subr.mxu0 0.0
        %1573 = vmatpush1.msra.mxu0 0.0
        %1574 = vmatprep.subr.mxu0 0.0
        %1575 = vmatpush1.msra.mxu0 0.0
        %1576 = vmatprep.subr.mxu0 0.0
        %1577 = vmatpush1.msra.mxu0 0.0
        %1578 = vmatprep.subr.mxu0 0.0
        %1579 = vmatpush1.msra.mxu0 0.0
        %1580 = vmatprep.subr.mxu0 0.0
        %1581 = vmatpush1.msra.mxu0 0.0
        %1582 = vmatprep.subr.mxu0 0.0
        %1583 = vmatpush1.msra.mxu0 0.0
        %1584 = vmatprep.subr.mxu0 0.0
        %1585 = vmatpush1.msra.mxu0 0.0
        %1586 = vmatprep.subr.mxu0 0.0
        %1587 = vmatpush1.msra.mxu0 0.0
        %1588 = vmatprep.subr.mxu0 0.0
        %1589 = vmatpush1.msra.mxu0 0.0
        %1590 = vmatprep.subr.mxu0 0.0
        %1591 = vmatpush1.msra.mxu0 0.0
        %1592 = vmatprep.subr.mxu0 0.0
        %1593 = vmatpush1.msra.mxu0 0.0
        %1594 = vmatprep.subr.mxu0 0.0
        %1595 = vmatpush1.msra.mxu0 0.0
        %1596 = vmatprep.subr.mxu0 0.0
        %1597 = vmatpush1.msra.mxu0 0.0
        %1598 = vmatprep.subr.mxu0 0.0
        %1599 = vmatpush1.msra.mxu0 0.0
        %1600 = vmatprep.mubr.f32.mxu0 0.0
        %1601 = vmatmul.mubr.f32.gmra.mrb[0].mxu0 %v1534
        %v1602 = vpop.f32.mrb[0].mxu0
        %v1603 = vadd.f32 0.0, %v1602
        %v1604 = vpop.f32.mrb[0].mxu0
        %1605 = vdwg.mxu0
        %v1606 = vadd.f32 %v1366, %v1603
        %1607 = vrot.lane.b32.xlu0 %v321, 48
        %v1608 = vpop.permute.xlu0 %1607
        %1609 = vrot.lane.b32.xlu0 %v323, 48
        %v1610 = vpop.permute.xlu0 %1609
        %v1611 = vsel %vm411, %v1608, 0
        %v1613 = vsel %vm411, %v1610, 0
        %1615 = vmatprep.subr.mxu0 0.0
        %1616 = vmatpush1.xpose.msra.mxu0 %v1613
        %1617 = vmatprep.subr.mxu0 0.0
        %1618 = vmatpush1.xpose.msra.mxu0 0.0
        %1619 = vmatprep.subr.mxu0 0.0
        %1620 = vmatpush1.xpose.msra.mxu0 0.0
        %1621 = vmatprep.subr.mxu0 0.0
        %1622 = vmatpush1.xpose.msra.mxu0 0.0
        %1623 = vmatprep.subr.mxu0 0.0
        %1624 = vmatpush1.xpose.msra.mxu0 0.0
        %1625 = vmatprep.subr.mxu0 0.0
        %1626 = vmatpush1.xpose.msra.mxu0 0.0
        %1627 = vmatprep.subr.mxu0 0.0
        %1628 = vmatpush1.xpose.msra.mxu0 0.0
        %1629 = vmatprep.subr.mxu0 0.0
        %1630 = vmatpush1.xpose.msra.mxu0 0.0
        %1631 = vmatprep.subr.mxu0 0.0
        %1632 = vmatpush1.xpose.msra.mxu0 0.0
        %1633 = vmatprep.subr.mxu0 0.0
        %1634 = vmatpush1.xpose.msra.mxu0 0.0
        %1635 = vmatprep.subr.mxu0 0.0
        %1636 = vmatpush1.xpose.msra.mxu0 0.0
        %1637 = vmatprep.subr.mxu0 0.0
        %1638 = vmatpush1.xpose.msra.mxu0 0.0
        %1639 = vmatprep.subr.mxu0 0.0
        %1640 = vmatpush1.xpose.msra.mxu0 0.0
        %1641 = vmatprep.subr.mxu0 0.0
        %1642 = vmatpush1.xpose.msra.mxu0 0.0
        %1643 = vmatprep.subr.mxu0 0.0
        %1644 = vmatpush1.xpose.msra.mxu0 0.0
        %1645 = vmatprep.subr.mxu0 0.0
        %1646 = vmatpush1.xpose.msra.mxu0 0.0
        %1647 = vmatprep.subr.mxu0 0.0
        %1648 = vmatpush1.xpose.msra.mxu0 0.0
        %1649 = vmatprep.subr.mxu0 0.0
        %1650 = vmatpush1.xpose.msra.mxu0 0.0
        %1651 = vmatprep.subr.mxu0 0.0
        %1652 = vmatpush1.xpose.msra.mxu0 0.0
        %1653 = vmatprep.subr.mxu0 0.0
        %1654 = vmatpush1.xpose.msra.mxu0 0.0
        %1655 = vmatprep.subr.mxu0 0.0
        %1656 = vmatpush1.xpose.msra.mxu0 0.0
        %1657 = vmatprep.subr.mxu0 0.0
        %1658 = vmatpush1.xpose.msra.mxu0 0.0
        %1659 = vmatprep.subr.mxu0 0.0
        %1660 = vmatpush1.xpose.msra.mxu0 0.0
        %1661 = vmatprep.subr.mxu0 0.0
        %1662 = vmatpush1.xpose.msra.mxu0 0.0
        %1663 = vmatprep.subr.mxu0 0.0
        %1664 = vmatpush1.xpose.msra.mxu0 0.0
        %1665 = vmatprep.subr.mxu0 0.0
        %1666 = vmatpush1.xpose.msra.mxu0 0.0
        %1667 = vmatprep.subr.mxu0 0.0
        %1668 = vmatpush1.xpose.msra.mxu0 0.0
        %1669 = vmatprep.subr.mxu0 0.0
        %1670 = vmatpush1.xpose.msra.mxu0 0.0
        %1671 = vmatprep.subr.mxu0 0.0
        %1672 = vmatpush1.xpose.msra.mxu0 0.0
        %1673 = vmatprep.subr.mxu0 0.0
        %1674 = vmatpush1.xpose.msra.mxu0 0.0
        %1675 = vmatprep.subr.mxu0 0.0
        %1676 = vmatpush1.xpose.msra.mxu0 0.0
        %1677 = vmatprep.subr.mxu0 0.0
        %1678 = vmatpush1.xpose.msra.mxu0 0.0
        %1679 = vmatprep.mubr.f32.mxu0 0.0
        %1680 = vmatmul.mubr.f32.gmra.mrb[0].mxu0 %v1611
        %v1681 = vpop.f32.mrb[0].mxu0
        %v1682 = vadd.f32 0.0, %v1681
        %v1683 = vpop.f32.mrb[0].mxu0
        %1684 = vdwg.mxu0
        %v1685 = vmul.f32 %v1682, 0.25
        %v1686 = vsel %vm489, %v1685, -inf
        %1687 = vmax.xlane.f32.xlu0 %v1686
        %v1688 = vpop.xlane.xlu0 %1687
        %v1689 = vsub.f32 %v1685, %v1688
        %v1690 = vmul.f32 %v1689, 1.442695
        %v1691 = vpow.pop %v1690
        %v1692 = vsel %vm489, %v1691, 0.0
        %1693 = vadd.xlane.f32.xlu0 %v1692
        %v1694 = vpop.xlane.xlu0 %1693
        %v1695 = vrcp.pop %v1694
        %v1696 = vmul.f32 %v1691, %v1695
        %1697 = vrot.lane.b32.xlu0 %v392, 48
        %v1698 = vpop.permute.xlu0 %1697
        %v1701 = vsel %vm489, %v1696, 0
        %1703 = vmatprep.subr.mxu0 0.0
        %1704 = vmatpush1.msra.mxu0 %v1698
        %1705 = vmatprep.subr.mxu0 0.0
        %1706 = vmatpush1.msra.mxu0 0.0
        %1707 = vmatprep.subr.mxu0 0.0
        %1708 = vmatpush1.msra.mxu0 0.0
        %1709 = vmatprep.subr.mxu0 0.0
        %1710 = vmatpush1.msra.mxu0 0.0
        %1711 = vmatprep.subr.mxu0 0.0
        %1712 = vmatpush1.msra.mxu0 0.0
        %1713 = vmatprep.subr.mxu0 0.0
        %1714 = vmatpush1.msra.mxu0 0.0
        %1715 = vmatprep.subr.mxu0 0.0
        %1716 = vmatpush1.msra.mxu0 0.0
        %1717 = vmatprep.subr.mxu0 0.0
        %1718 = vmatpush1.msra.mxu0 0.0
        %1719 = vmatprep.subr.mxu0 0.0
        %1720 = vmatpush1.msra.mxu0 0.0
        %1721 = vmatprep.subr.mxu0 0.0
        %1722 = vmatpush1.msra.mxu0 0.0
        %1723 = vmatprep.subr.mxu0 0.0
        %1724 = vmatpush1.msra.mxu0 0.0
        %1725 = vmatprep.subr.mxu0 0.0
        %1726 = vmatpush1.msra.mxu0 0.0
        %1727 = vmatprep.subr.mxu0 0.0
        %1728 = vmatpush1.msra.mxu0 0.0
        %1729 = vmatprep.subr.mxu0 0.0
        %1730 = vmatpush1.msra.mxu0 0.0
        %1731 = vmatprep.subr.mxu0 0.0
        %1732 = vmatpush1.msra.mxu0 0.0
        %1733 = vmatprep.subr.mxu0 0.0
        %1734 = vmatpush1.msra.mxu0 0.0
        %1735 = vmatprep.subr.mxu0 0.0
        %1736 = vmatpush1.msra.mxu0 0.0
        %1737 = vmatprep.subr.mxu0 0.0
        %1738 = vmatpush1.msra.mxu0 0.0
        %1739 = vmatprep.subr.mxu0 0.0
        %1740 = vmatpush1.msra.mxu0 0.0
        %1741 = vmatprep.subr.mxu0 0.0
        %1742 = vmatpush1.msra.mxu0 0.0
        %1743 = vmatprep.subr.mxu0 0.0
        %1744 = vmatpush1.msra.mxu0 0.0
        %1745 = vmatprep.subr.mxu0 0.0
        %1746 = vmatpush1.msra.mxu0 0.0
        %1747 = vmatprep.subr.mxu0 0.0
        %1748 = vmatpush1.msra.mxu0 0.0
        %1749 = vmatprep.subr.mxu0 0.0
        %1750 = vmatpush1.msra.mxu0 0.0
        %1751 = vmatprep.subr.mxu0 0.0
        %1752 = vmatpush1.msra.mxu0 0.0
        %1753 = vmatprep.subr.mxu0 0.0
        %1754 = vmatpush1.msra.mxu0 0.0
        %1755 = vmatprep.subr.mxu0 0.0
        %1756 = vmatpush1.msra.mxu0 0.0
        %1757 = vmatprep.subr.mxu0 0.0
        %1758 = vmatpush1.msra.mxu0 0.0
        %1759 = vmatprep.subr.mxu0 0.0
        %1760 = vmatpush1.msra.mxu0 0.0
        %1761 = vmatprep.subr.mxu0 0.0
        %1762 = vmatpush1.msra.mxu0 0.0
        %1763 = vmatprep.subr.mxu0 0.0
        %1764 = vmatpush1.msra.mxu0 0.0
        %1765 = vmatprep.subr.mxu0 0.0
        %1766 = vmatpush1.msra.mxu0 0.0
        %1767 = vmatprep.mubr.f32.mxu0 0.0
        %1768 = vmatmul.mubr.f32.gmra.mrb[0].mxu0 %v1701
        %v1769 = vpop.f32.mrb[0].mxu0
        %v1770 = vadd.f32 0.0, %v1769
        %v1771 = vpop.f32.mrb[0].mxu0
        %1772 = vdwg.mxu0
        %v1774 = vsel %vm411, %v1770, 0
        %1776 = vmatprep.subr.mxu0 0.0
        %1777 = vmatpush1.msra.mxu0 %v405
        %1778 = vmatprep.subr.mxu0 0.0
        %1779 = vmatpush1.msra.mxu0 %v406
        %1780 = vmatprep.subr.mxu0 0.0
        %1781 = vmatpush1.msra.mxu0 0.0
        %1782 = vmatprep.subr.mxu0 0.0
        %1783 = vmatpush1.msra.mxu0 0.0
        %1784 = vmatprep.subr.mxu0 0.0
        %1785 = vmatpush1.msra.mxu0 0.0
        %1786 = vmatprep.subr.mxu0 0.0
        %1787 = vmatpush1.msra.mxu0 0.0
        %1788 = vmatprep.subr.mxu0 0.0
        %1789 = vmatpush1.msra.mxu0 0.0
        %1790 = vmatprep.subr.mxu0 0.0
        %1791 = vmatpush1.msra.mxu0 0.0
        %1792 = vmatprep.subr.mxu0 0.0
        %1793 = vmatpush1.msra.mxu0 0.0
        %1794 = vmatprep.subr.mxu0 0.0
        %1795 = vmatpush1.msra.mxu0 0.0
        %1796 = vmatprep.subr.mxu0 0.0
        %1797 = vmatpush1.msra.mxu0 0.0
        %1798 = vmatprep.subr.mxu0 0.0
        %1799 = vmatpush1.msra.mxu0 0.0
        %1800 = vmatprep.subr.mxu0 0.0
        %1801 = vmatpush1.msra.mxu0 0.0
        %1802 = vmatprep.subr.mxu0 0.0
        %1803 = vmatpush1.msra.mxu0 0.0
        %1804 = vmatprep.subr.mxu0 0.0
        %1805 = vmatpush1.msra.mxu0 0.0
        %1806 = vmatprep.subr.mxu0 0.0
        %1807 = vmatpush1.msra.mxu0 0.0
        %1808 = vmatprep.subr.mxu0 0.0
        %1809 = vmatpush1.msra.mxu0 0.0
        %1810 = vmatprep.subr.mxu0 0.0
        %1811 = vmatpush1.msra.mxu0 0.0
        %1812 = vmatprep.subr.mxu0 0.0
        %1813 = vmatpush1.msra.mxu0 0.0
        %1814 = vmatprep.subr.mxu0 0.0
        %1815 = vmatpush1.msra.mxu0 0.0
        %1816 = vmatprep.subr.mxu0 0.0
        %1817 = vmatpush1.msra.mxu0 0.0
        %1818 = vmatprep.subr.mxu0 0.0
        %1819 = vmatpush1.msra.mxu0 0.0
        %1820 = vmatprep.subr.mxu0 0.0
        %1821 = vmatpush1.msra.mxu0 0.0
        %1822 = vmatprep.subr.mxu0 0.0
        %1823 = vmatpush1.msra.mxu0 0.0
        %1824 = vmatprep.subr.mxu0 0.0
        %1825 = vmatpush1.msra.mxu0 0.0
        %1826 = vmatprep.subr.mxu0 0.0
        %1827 = vmatpush1.msra.mxu0 0.0
        %1828 = vmatprep.subr.mxu0 0.0
        %1829 = vmatpush1.msra.mxu0 0.0
        %1830 = vmatprep.subr.mxu0 0.0
        %1831 = vmatpush1.msra.mxu0 0.0
        %1832 = vmatprep.subr.mxu0 0.0
        %1833 = vmatpush1.msra.mxu0 0.0
        %1834 = vmatprep.subr.mxu0 0.0
        %1835 = vmatpush1.msra.mxu0 0.0
        %1836 = vmatprep.subr.mxu0 0.0
        %1837 = vmatpush1.msra.mxu0 0.0
        %1838 = vmatprep.subr.mxu0 0.0
        %1839 = vmatpush1.msra.mxu0 0.0
        %1840 = vmatprep.mubr.f32.mxu0 0.0
        %1841 = vmatmul.mubr.f32.gmra.mrb[0].mxu0 %v1774
        %v1842 = vpop.f32.mrb[0].mxu0
        %v1843 = vadd.f32 0.0, %v1842
        %v1844 = vpop.f32.mrb[0].mxu0
        %1845 = vdwg.mxu0
        %v1846 = vadd.f32 %v1606, %v1843
        %1847 = vrot.lane.b32.xlu0 %v321, 32
        %v1848 = vpop.permute.xlu0 %1847
        %1849 = vrot.lane.b32.xlu0 %v323, 32
        %v1850 = vpop.permute.xlu0 %1849
        %v1851 = vsel %vm411, %v1848, 0
        %v1853 = vsel %vm411, %v1850, 0
        %1855 = vmatprep.subr.mxu0 0.0
        %1856 = vmatpush1.xpose.msra.mxu0 %v1853
        %1857 = vmatprep.subr.mxu0 0.0
        %1858 = vmatpush1.xpose.msra.mxu0 0.0
        %1859 = vmatprep.subr.mxu0 0.0
        %1860 = vmatpush1.xpose.msra.mxu0 0.0
        %1861 = vmatprep.subr.mxu0 0.0
        %1862 = vmatpush1.xpose.msra.mxu0 0.0
        %1863 = vmatprep.subr.mxu0 0.0
        %1864 = vmatpush1.xpose.msra.mxu0 0.0
        %1865 = vmatprep.subr.mxu0 0.0
        %1866 = vmatpush1.xpose.msra.mxu0 0.0
        %1867 = vmatprep.subr.mxu0 0.0
        %1868 = vmatpush1.xpose.msra.mxu0 0.0
        %1869 = vmatprep.subr.mxu0 0.0
        %1870 = vmatpush1.xpose.msra.mxu0 0.0
        %1871 = vmatprep.subr.mxu0 0.0
        %1872 = vmatpush1.xpose.msra.mxu0 0.0
        %1873 = vmatprep.subr.mxu0 0.0
        %1874 = vmatpush1.xpose.msra.mxu0 0.0
        %1875 = vmatprep.subr.mxu0 0.0
        %1876 = vmatpush1.xpose.msra.mxu0 0.0
        %1877 = vmatprep.subr.mxu0 0.0
        %1878 = vmatpush1.xpose.msra.mxu0 0.0
        %1879 = vmatprep.subr.mxu0 0.0
        %1880 = vmatpush1.xpose.msra.mxu0 0.0
        %1881 = vmatprep.subr.mxu0 0.0
        %1882 = vmatpush1.xpose.msra.mxu0 0.0
        %1883 = vmatprep.subr.mxu0 0.0
        %1884 = vmatpush1.xpose.msra.mxu0 0.0
        %1885 = vmatprep.subr.mxu0 0.0
        %1886 = vmatpush1.xpose.msra.mxu0 0.0
        %1887 = vmatprep.subr.mxu0 0.0
        %1888 = vmatpush1.xpose.msra.mxu0 0.0
        %1889 = vmatprep.subr.mxu0 0.0
        %1890 = vmatpush1.xpose.msra.mxu0 0.0
        %1891 = vmatprep.subr.mxu0 0.0
        %1892 = vmatpush1.xpose.msra.mxu0 0.0
        %1893 = vmatprep.subr.mxu0 0.0
        %1894 = vmatpush1.xpose.msra.mxu0 0.0
        %1895 = vmatprep.subr.mxu0 0.0
        %1896 = vmatpush1.xpose.msra.mxu0 0.0
        %1897 = vmatprep.subr.mxu0 0.0
        %1898 = vmatpush1.xpose.msra.mxu0 0.0
        %1899 = vmatprep.subr.mxu0 0.0
        %1900 = vmatpush1.xpose.msra.mxu0 0.0
        %1901 = vmatprep.subr.mxu0 0.0
        %1902 = vmatpush1.xpose.msra.mxu0 0.0
        %1903 = vmatprep.subr.mxu0 0.0
        %1904 = vmatpush1.xpose.msra.mxu0 0.0
        %1905 = vmatprep.subr.mxu0 0.0
        %1906 = vmatpush1.xpose.msra.mxu0 0.0
        %1907 = vmatprep.subr.mxu0 0.0
        %1908 = vmatpush1.xpose.msra.mxu0 0.0
        %1909 = vmatprep.subr.mxu0 0.0
        %1910 = vmatpush1.xpose.msra.mxu0 0.0
        %1911 = vmatprep.subr.mxu0 0.0
        %1912 = vmatpush1.xpose.msra.mxu0 0.0
        %1913 = vmatprep.subr.mxu0 0.0
        %1914 = vmatpush1.xpose.msra.mxu0 0.0
        %1915 = vmatprep.subr.mxu0 0.0
        %1916 = vmatpush1.xpose.msra.mxu0 0.0
        %1917 = vmatprep.subr.mxu0 0.0
        %1918 = vmatpush1.xpose.msra.mxu0 0.0
        %1919 = vmatprep.mubr.f32.mxu0 0.0
        %1920 = vmatmul.mubr.f32.gmra.mrb[0].mxu0 %v1851
        %v1921 = vpop.f32.mrb[0].mxu0
        %v1922 = vadd.f32 0.0, %v1921
        %v1923 = vpop.f32.mrb[0].mxu0
        %1924 = vdwg.mxu0
        %v1925 = vmul.f32 %v1922, 0.25
        %v1926 = vsel %vm489, %v1925, -inf
        %1927 = vmax.xlane.f32.xlu0 %v1926
        %v1928 = vpop.xlane.xlu0 %1927
        %v1929 = vsub.f32 %v1925, %v1928
        %v1930 = vmul.f32 %v1929, 1.442695
        %v1931 = vpow.pop %v1930
        %v1932 = vsel %vm489, %v1931, 0.0
        %1933 = vadd.xlane.f32.xlu0 %v1932
        %v1934 = vpop.xlane.xlu0 %1933
        %v1935 = vrcp.pop %v1934
        %v1936 = vmul.f32 %v1931, %v1935
        %1937 = vrot.lane.b32.xlu0 %v392, 32
        %v1938 = vpop.permute.xlu0 %1937
        %v1941 = vsel %vm489, %v1936, 0
        %1943 = vmatprep.subr.mxu0 0.0
        %1944 = vmatpush1.msra.mxu0 %v1938
        %1945 = vmatprep.subr.mxu0 0.0
        %1946 = vmatpush1.msra.mxu0 0.0
        %1947 = vmatprep.subr.mxu0 0.0
        %1948 = vmatpush1.msra.mxu0 0.0
        %1949 = vmatprep.subr.mxu0 0.0
        %1950 = vmatpush1.msra.mxu0 0.0
        %1951 = vmatprep.subr.mxu0 0.0
        %1952 = vmatpush1.msra.mxu0 0.0
        %1953 = vmatprep.subr.mxu0 0.0
        %1954 = vmatpush1.msra.mxu0 0.0
        %1955 = vmatprep.subr.mxu0 0.0
        %1956 = vmatpush1.msra.mxu0 0.0
        %1957 = vmatprep.subr.mxu0 0.0
        %1958 = vmatpush1.msra.mxu0 0.0
        %1959 = vmatprep.subr.mxu0 0.0
        %1960 = vmatpush1.msra.mxu0 0.0
        %1961 = vmatprep.subr.mxu0 0.0
        %1962 = vmatpush1.msra.mxu0 0.0
        %1963 = vmatprep.subr.mxu0 0.0
        %1964 = vmatpush1.msra.mxu0 0.0
        %1965 = vmatprep.subr.mxu0 0.0
        %1966 = vmatpush1.msra.mxu0 0.0
        %1967 = vmatprep.subr.mxu0 0.0
        %1968 = vmatpush1.msra.mxu0 0.0
        %1969 = vmatprep.subr.mxu0 0.0
        %1970 = vmatpush1.msra.mxu0 0.0
        %1971 = vmatprep.subr.mxu0 0.0
        %1972 = vmatpush1.msra.mxu0 0.0
        %1973 = vmatprep.subr.mxu0 0.0
        %1974 = vmatpush1.msra.mxu0 0.0
        %1975 = vmatprep.subr.mxu0 0.0
        %1976 = vmatpush1.msra.mxu0 0.0
        %1977 = vmatprep.subr.mxu0 0.0
        %1978 = vmatpush1.msra.mxu0 0.0
        %1979 = vmatprep.subr.mxu0 0.0
        %1980 = vmatpush1.msra.mxu0 0.0
        %1981 = vmatprep.subr.mxu0 0.0
        %1982 = vmatpush1.msra.mxu0 0.0
        %1983 = vmatprep.subr.mxu0 0.0
        %1984 = vmatpush1.msra.mxu0 0.0
        %1985 = vmatprep.subr.mxu0 0.0
        %1986 = vmatpush1.msra.mxu0 0.0
        %1987 = vmatprep.subr.mxu0 0.0
        %1988 = vmatpush1.msra.mxu0 0.0
        %1989 = vmatprep.subr.mxu0 0.0
        %1990 = vmatpush1.msra.mxu0 0.0
        %1991 = vmatprep.subr.mxu0 0.0
        %1992 = vmatpush1.msra.mxu0 0.0
        %1993 = vmatprep.subr.mxu0 0.0
        %1994 = vmatpush1.msra.mxu0 0.0
        %1995 = vmatprep.subr.mxu0 0.0
        %1996 = vmatpush1.msra.mxu0 0.0
        %1997 = vmatprep.subr.mxu0 0.0
        %1998 = vmatpush1.msra.mxu0 0.0
        %1999 = vmatprep.subr.mxu0 0.0
        %2000 = vmatpush1.msra.mxu0 0.0
        %2001 = vmatprep.subr.mxu0 0.0
        %2002 = vmatpush1.msra.mxu0 0.0
        %2003 = vmatprep.subr.mxu0 0.0
        %2004 = vmatpush1.msra.mxu0 0.0
        %2005 = vmatprep.subr.mxu0 0.0
        %2006 = vmatpush1.msra.mxu0 0.0
        %2007 = vmatprep.mubr.f32.mxu0 0.0
        %2008 = vmatmul.mubr.f32.gmra.mrb[0].mxu0 %v1941
        %v2009 = vpop.f32.mrb[0].mxu0
        %v2010 = vadd.f32 0.0, %v2009
        %v2011 = vpop.f32.mrb[0].mxu0
        %2012 = vdwg.mxu0
        %v2014 = vsel %vm411, %v2010, 0
        %2016 = vmatprep.subr.mxu0 0.0
        %2017 = vmatpush1.msra.mxu0 %v407
        %2018 = vmatprep.subr.mxu0 0.0
        %2019 = vmatpush1.msra.mxu0 %v408
        %2020 = vmatprep.subr.mxu0 0.0
        %2021 = vmatpush1.msra.mxu0 0.0
        %2022 = vmatprep.subr.mxu0 0.0
        %2023 = vmatpush1.msra.mxu0 0.0
        %2024 = vmatprep.subr.mxu0 0.0
        %2025 = vmatpush1.msra.mxu0 0.0
        %2026 = vmatprep.subr.mxu0 0.0
        %2027 = vmatpush1.msra.mxu0 0.0
        %2028 = vmatprep.subr.mxu0 0.0
        %2029 = vmatpush1.msra.mxu0 0.0
        %2030 = vmatprep.subr.mxu0 0.0
        %2031 = vmatpush1.msra.mxu0 0.0
        %2032 = vmatprep.subr.mxu0 0.0
        %2033 = vmatpush1.msra.mxu0 0.0
        %2034 = vmatprep.subr.mxu0 0.0
        %2035 = vmatpush1.msra.mxu0 0.0
        %2036 = vmatprep.subr.mxu0 0.0
        %2037 = vmatpush1.msra.mxu0 0.0
        %2038 = vmatprep.subr.mxu0 0.0
        %2039 = vmatpush1.msra.mxu0 0.0
        %2040 = vmatprep.subr.mxu0 0.0
        %2041 = vmatpush1.msra.mxu0 0.0
        %2042 = vmatprep.subr.mxu0 0.0
        %2043 = vmatpush1.msra.mxu0 0.0
        %2044 = vmatprep.subr.mxu0 0.0
        %2045 = vmatpush1.msra.mxu0 0.0
        %2046 = vmatprep.subr.mxu0 0.0
        %2047 = vmatpush1.msra.mxu0 0.0
        %2048 = vmatprep.subr.mxu0 0.0
        %2049 = vmatpush1.msra.mxu0 0.0
        %2050 = vmatprep.subr.mxu0 0.0
        %2051 = vmatpush1.msra.mxu0 0.0
        %2052 = vmatprep.subr.mxu0 0.0
        %2053 = vmatpush1.msra.mxu0 0.0
        %2054 = vmatprep.subr.mxu0 0.0
        %2055 = vmatpush1.msra.mxu0 0.0
        %2056 = vmatprep.subr.mxu0 0.0
        %2057 = vmatpush1.msra.mxu0 0.0
        %2058 = vmatprep.subr.mxu0 0.0
        %2059 = vmatpush1.msra.mxu0 0.0
        %2060 = vmatprep.subr.mxu0 0.0
        %2061 = vmatpush1.msra.mxu0 0.0
        %2062 = vmatprep.subr.mxu0 0.0
        %2063 = vmatpush1.msra.mxu0 0.0
        %2064 = vmatprep.subr.mxu0 0.0
        %2065 = vmatpush1.msra.mxu0 0.0
        %2066 = vmatprep.subr.mxu0 0.0
        %2067 = vmatpush1.msra.mxu0 0.0
        %2068 = vmatprep.subr.mxu0 0.0
        %2069 = vmatpush1.msra.mxu0 0.0
        %2070 = vmatprep.subr.mxu0 0.0
        %2071 = vmatpush1.msra.mxu0 0.0
        %2072 = vmatprep.subr.mxu0 0.0
        %2073 = vmatpush1.msra.mxu0 0.0
        %2074 = vmatprep.subr.mxu0 0.0
        %2075 = vmatpush1.msra.mxu0 0.0
        %2076 = vmatprep.subr.mxu0 0.0
        %2077 = vmatpush1.msra.mxu0 0.0
        %2078 = vmatprep.subr.mxu0 0.0
        %2079 = vmatpush1.msra.mxu0 0.0
        %2080 = vmatprep.mubr.f32.mxu0 0.0
        %2081 = vmatmul.mubr.f32.gmra.mrb[0].mxu0 %v2014
        %v2082 = vpop.f32.mrb[0].mxu0
        %v2083 = vadd.f32 0.0, %v2082
        %v2084 = vpop.f32.mrb[0].mxu0
        %2085 = vdwg.mxu0
        %v2086 = vadd.f32 %v1846, %v2083
        %2087 = vrot.lane.b32.xlu0 %v321, 16
        %v2088 = vpop.permute.xlu0 %2087
        %2089 = vrot.lane.b32.xlu0 %v323, 16
        %v2090 = vpop.permute.xlu0 %2089
        %v2091 = vsel %vm411, %v2088, 0
        %v2093 = vsel %vm411, %v2090, 0
        %2095 = vmatprep.subr.mxu0 0.0
        %2096 = vmatpush1.xpose.msra.mxu0 %v2093
        %2097 = vmatprep.subr.mxu0 0.0
        %2098 = vmatpush1.xpose.msra.mxu0 0.0
        %2099 = vmatprep.subr.mxu0 0.0
        %2100 = vmatpush1.xpose.msra.mxu0 0.0
        %2101 = vmatprep.subr.mxu0 0.0
        %2102 = vmatpush1.xpose.msra.mxu0 0.0
        %2103 = vmatprep.subr.mxu0 0.0
        %2104 = vmatpush1.xpose.msra.mxu0 0.0
        %2105 = vmatprep.subr.mxu0 0.0
        %2106 = vmatpush1.xpose.msra.mxu0 0.0
        %2107 = vmatprep.subr.mxu0 0.0
        %2108 = vmatpush1.xpose.msra.mxu0 0.0
        %2109 = vmatprep.subr.mxu0 0.0
        %2110 = vmatpush1.xpose.msra.mxu0 0.0
        %2111 = vmatprep.subr.mxu0 0.0
        %2112 = vmatpush1.xpose.msra.mxu0 0.0
        %2113 = vmatprep.subr.mxu0 0.0
        %2114 = vmatpush1.xpose.msra.mxu0 0.0
        %2115 = vmatprep.subr.mxu0 0.0
        %2116 = vmatpush1.xpose.msra.mxu0 0.0
        %2117 = vmatprep.subr.mxu0 0.0
        %2118 = vmatpush1.xpose.msra.mxu0 0.0
        %2119 = vmatprep.subr.mxu0 0.0
        %2120 = vmatpush1.xpose.msra.mxu0 0.0
        %2121 = vmatprep.subr.mxu0 0.0
        %2122 = vmatpush1.xpose.msra.mxu0 0.0
        %2123 = vmatprep.subr.mxu0 0.0
        %2124 = vmatpush1.xpose.msra.mxu0 0.0
        %2125 = vmatprep.subr.mxu0 0.0
        %2126 = vmatpush1.xpose.msra.mxu0 0.0
        %2127 = vmatprep.subr.mxu0 0.0
        %2128 = vmatpush1.xpose.msra.mxu0 0.0
        %2129 = vmatprep.subr.mxu0 0.0
        %2130 = vmatpush1.xpose.msra.mxu0 0.0
        %2131 = vmatprep.subr.mxu0 0.0
        %2132 = vmatpush1.xpose.msra.mxu0 0.0
        %2133 = vmatprep.subr.mxu0 0.0
        %2134 = vmatpush1.xpose.msra.mxu0 0.0
        %2135 = vmatprep.subr.mxu0 0.0
        %2136 = vmatpush1.xpose.msra.mxu0 0.0
        %2137 = vmatprep.subr.mxu0 0.0
        %2138 = vmatpush1.xpose.msra.mxu0 0.0
        %2139 = vmatprep.subr.mxu0 0.0
        %2140 = vmatpush1.xpose.msra.mxu0 0.0
        %2141 = vmatprep.subr.mxu0 0.0
        %2142 = vmatpush1.xpose.msra.mxu0 0.0
        %2143 = vmatprep.subr.mxu0 0.0
        %2144 = vmatpush1.xpose.msra.mxu0 0.0
        %2145 = vmatprep.subr.mxu0 0.0
        %2146 = vmatpush1.xpose.msra.mxu0 0.0
        %2147 = vmatprep.subr.mxu0 0.0
        %2148 = vmatpush1.xpose.msra.mxu0 0.0
        %2149 = vmatprep.subr.mxu0 0.0
        %2150 = vmatpush1.xpose.msra.mxu0 0.0
        %2151 = vmatprep.subr.mxu0 0.0
        %2152 = vmatpush1.xpose.msra.mxu0 0.0
        %2153 = vmatprep.subr.mxu0 0.0
        %2154 = vmatpush1.xpose.msra.mxu0 0.0
        %2155 = vmatprep.subr.mxu0 0.0
        %2156 = vmatpush1.xpose.msra.mxu0 0.0
        %2157 = vmatprep.subr.mxu0 0.0
        %2158 = vmatpush1.xpose.msra.mxu0 0.0
        %2159 = vmatprep.mubr.f32.mxu0 0.0
        %2160 = vmatmul.mubr.f32.gmra.mrb[0].mxu0 %v2091
        %v2161 = vpop.f32.mrb[0].mxu0
        %v2162 = vadd.f32 0.0, %v2161
        %v2163 = vpop.f32.mrb[0].mxu0
        %2164 = vdwg.mxu0
        %v2165 = vmul.f32 %v2162, 0.25
        %v2166 = vsel %vm489, %v2165, -inf
        %2167 = vmax.xlane.f32.xlu0 %v2166
        %v2168 = vpop.xlane.xlu0 %2167
        %v2169 = vsub.f32 %v2165, %v2168
        %v2170 = vmul.f32 %v2169, 1.442695
        %v2171 = vpow.pop %v2170
        %v2172 = vsel %vm489, %v2171, 0.0
        %2173 = vadd.xlane.f32.xlu0 %v2172
        %v2174 = vpop.xlane.xlu0 %2173
        %v2175 = vrcp.pop %v2174
        %v2176 = vmul.f32 %v2171, %v2175
        %2177 = vrot.lane.b32.xlu0 %v392, 16
        %v2178 = vpop.permute.xlu0 %2177
        %v2181 = vsel %vm489, %v2176, 0
        %2183 = vmatprep.subr.mxu0 0.0
        %2184 = vmatpush1.msra.mxu0 %v2178
        %2185 = vmatprep.subr.mxu0 0.0
        %2186 = vmatpush1.msra.mxu0 0.0
        %2187 = vmatprep.subr.mxu0 0.0
        %2188 = vmatpush1.msra.mxu0 0.0
        %2189 = vmatprep.subr.mxu0 0.0
        %2190 = vmatpush1.msra.mxu0 0.0
        %2191 = vmatprep.subr.mxu0 0.0
        %2192 = vmatpush1.msra.mxu0 0.0
        %2193 = vmatprep.subr.mxu0 0.0
        %2194 = vmatpush1.msra.mxu0 0.0
        %2195 = vmatprep.subr.mxu0 0.0
        %2196 = vmatpush1.msra.mxu0 0.0
        %2197 = vmatprep.subr.mxu0 0.0
        %2198 = vmatpush1.msra.mxu0 0.0
        %2199 = vmatprep.subr.mxu0 0.0
        %2200 = vmatpush1.msra.mxu0 0.0
        %2201 = vmatprep.subr.mxu0 0.0
        %2202 = vmatpush1.msra.mxu0 0.0
        %2203 = vmatprep.subr.mxu0 0.0
        %2204 = vmatpush1.msra.mxu0 0.0
        %2205 = vmatprep.subr.mxu0 0.0
        %2206 = vmatpush1.msra.mxu0 0.0
        %2207 = vmatprep.subr.mxu0 0.0
        %2208 = vmatpush1.msra.mxu0 0.0
        %2209 = vmatprep.subr.mxu0 0.0
        %2210 = vmatpush1.msra.mxu0 0.0
        %2211 = vmatprep.subr.mxu0 0.0
        %2212 = vmatpush1.msra.mxu0 0.0
        %2213 = vmatprep.subr.mxu0 0.0
        %2214 = vmatpush1.msra.mxu0 0.0
        %2215 = vmatprep.subr.mxu0 0.0
        %2216 = vmatpush1.msra.mxu0 0.0
        %2217 = vmatprep.subr.mxu0 0.0
        %2218 = vmatpush1.msra.mxu0 0.0
        %2219 = vmatprep.subr.mxu0 0.0
        %2220 = vmatpush1.msra.mxu0 0.0
        %2221 = vmatprep.subr.mxu0 0.0
        %2222 = vmatpush1.msra.mxu0 0.0
        %2223 = vmatprep.subr.mxu0 0.0
        %2224 = vmatpush1.msra.mxu0 0.0
        %2225 = vmatprep.subr.mxu0 0.0
        %2226 = vmatpush1.msra.mxu0 0.0
        %2227 = vmatprep.subr.mxu0 0.0
        %2228 = vmatpush1.msra.mxu0 0.0
        %2229 = vmatprep.subr.mxu0 0.0
        %2230 = vmatpush1.msra.mxu0 0.0
        %2231 = vmatprep.subr.mxu0 0.0
        %2232 = vmatpush1.msra.mxu0 0.0
        %2233 = vmatprep.subr.mxu0 0.0
        %2234 = vmatpush1.msra.mxu0 0.0
        %2235 = vmatprep.subr.mxu0 0.0
        %2236 = vmatpush1.msra.mxu0 0.0
        %2237 = vmatprep.subr.mxu0 0.0
        %2238 = vmatpush1.msra.mxu0 0.0
        %2239 = vmatprep.subr.mxu0 0.0
        %2240 = vmatpush1.msra.mxu0 0.0
        %2241 = vmatprep.subr.mxu0 0.0
        %2242 = vmatpush1.msra.mxu0 0.0
        %2243 = vmatprep.subr.mxu0 0.0
        %2244 = vmatpush1.msra.mxu0 0.0
        %2245 = vmatprep.subr.mxu0 0.0
        %2246 = vmatpush1.msra.mxu0 0.0
        %2247 = vmatprep.mubr.f32.mxu0 0.0
        %2248 = vmatmul.mubr.f32.gmra.mrb[0].mxu0 %v2181
        %v2249 = vpop.f32.mrb[0].mxu0
        %v2250 = vadd.f32 0.0, %v2249
        %v2251 = vpop.f32.mrb[0].mxu0
        %2252 = vdwg.mxu0
        %v2254 = vsel %vm411, %v2250, 0
        %2256 = vmatprep.subr.mxu0 0.0
        %2257 = vmatpush1.msra.mxu0 %v409
        %2258 = vmatprep.subr.mxu0 0.0
        %2259 = vmatpush1.msra.mxu0 %v410
        %2260 = vmatprep.subr.mxu0 0.0
        %2261 = vmatpush1.msra.mxu0 0.0
        %2262 = vmatprep.subr.mxu0 0.0
        %2263 = vmatpush1.msra.mxu0 0.0
        %2264 = vmatprep.subr.mxu0 0.0
        %2265 = vmatpush1.msra.mxu0 0.0
        %2266 = vmatprep.subr.mxu0 0.0
        %2267 = vmatpush1.msra.mxu0 0.0
        %2268 = vmatprep.subr.mxu0 0.0
        %2269 = vmatpush1.msra.mxu0 0.0
        %2270 = vmatprep.subr.mxu0 0.0
        %2271 = vmatpush1.msra.mxu0 0.0
        %2272 = vmatprep.subr.mxu0 0.0
        %2273 = vmatpush1.msra.mxu0 0.0
        %2274 = vmatprep.subr.mxu0 0.0
        %2275 = vmatpush1.msra.mxu0 0.0
        %2276 = vmatprep.subr.mxu0 0.0
        %2277 = vmatpush1.msra.mxu0 0.0
        %2278 = vmatprep.subr.mxu0 0.0
        %2279 = vmatpush1.msra.mxu0 0.0
        %2280 = vmatprep.subr.mxu0 0.0
        %2281 = vmatpush1.msra.mxu0 0.0
        %2282 = vmatprep.subr.mxu0 0.0
        %2283 = vmatpush1.msra.mxu0 0.0
        %2284 = vmatprep.subr.mxu0 0.0
        %2285 = vmatpush1.msra.mxu0 0.0
        %2286 = vmatprep.subr.mxu0 0.0
        %2287 = vmatpush1.msra.mxu0 0.0
        %2288 = vmatprep.subr.mxu0 0.0
        %2289 = vmatpush1.msra.mxu0 0.0
        %2290 = vmatprep.subr.mxu0 0.0
        %2291 = vmatpush1.msra.mxu0 0.0
        %2292 = vmatprep.subr.mxu0 0.0
        %2293 = vmatpush1.msra.mxu0 0.0
        %2294 = vmatprep.subr.mxu0 0.0
        %2295 = vmatpush1.msra.mxu0 0.0
        %2296 = vmatprep.subr.mxu0 0.0
        %2297 = vmatpush1.msra.mxu0 0.0
        %2298 = vmatprep.subr.mxu0 0.0
        %2299 = vmatpush1.msra.mxu0 0.0
        %2300 = vmatprep.subr.mxu0 0.0
        %2301 = vmatpush1.msra.mxu0 0.0
        %2302 = vmatprep.subr.mxu0 0.0
        %2303 = vmatpush1.msra.mxu0 0.0
        %2304 = vmatprep.subr.mxu0 0.0
        %2305 = vmatpush1.msra.mxu0 0.0
        %2306 = vmatprep.subr.mxu0 0.0
        %2307 = vmatpush1.msra.mxu0 0.0
        %2308 = vmatprep.subr.mxu0 0.0
        %2309 = vmatpush1.msra.mxu0 0.0
        %2310 = vmatprep.subr.mxu0 0.0
        %2311 = vmatpush1.msra.mxu0 0.0
        %2312 = vmatprep.subr.mxu0 0.0
        %2313 = vmatpush1.msra.mxu0 0.0
        %2314 = vmatprep.subr.mxu0 0.0
        %2315 = vmatpush1.msra.mxu0 0.0
        %2316 = vmatprep.subr.mxu0 0.0
        %2317 = vmatpush1.msra.mxu0 0.0
        %2318 = vmatprep.subr.mxu0 0.0
        %2319 = vmatpush1.msra.mxu0 0.0
        %2320 = vmatprep.mubr.f32.mxu0 0.0
        %2321 = vmatmul.mubr.f32.gmra.mrb[0].mxu0 %v2254
        %v2322 = vpop.f32.mrb[0].mxu0
        %v2323 = vadd.f32 0.0, %v2322
        %v2324 = vpop.f32.mrb[0].mxu0
        %2325 = vdwg.mxu0
        %v2326 = vadd.f32 %v2086, %v2323
        %v2327 = vld [vmem:[%s4] sm:$0x1]
        %v2329 = vlaneseq
        %v2330 = vshrl.u32 %v2329, 7
        %v2331 = vsub.s32 0, %v2330
        %v2332 = vrot.slane %v2327, %v2331
        %v2334 = vadd.f32 %v2326, %v2332
        %2335 = vst.msk [vmem:[%s215] sm:$0xff] %vm411, %v2334
        %s2336 = sand.u32 %s137, 1
        %s2337 = scalar_lea.sflag [#allocation3], %s2336
        %s2338 = sand.u32 %s137, 1
        %s2339 = smul.addr %s2338, 8
        %s2340 = scalar_lea.vmem [#allocation2], %s2339
        // Predicated region
        $region41: #{tpu_custom_call.1} parent=39 // pred_check
          %p2341 = pneg %p147
        $region42: #{tpu_custom_call.1} parent=39 // pred_check_branch
          %2343 = sbr.rel (%p2341) target = $region44
        $region43: #{tpu_custom_call.1} parent=39 // pred_region
          %s2345 = ssub.s32 128, 128
          %2346 = vsyncadd %s2337, %s2345
          %s2347 = smul.addr %s19, 128
          %s2348 = scalar_lea.hbm %s5, %s2347
          %s2350 = sshll.u32 %s2340, 4
          %s2351 = int_to_ptr.vmem [resolvable:$true] %s2350
          %2353 = dma.vmem_to_hbm [thread:$0]  %s2351, 128, %s2348, %s2337
        $region44: #{tpu_custom_call.1} parent=39 // pred_fallthru
          _
      $region40: #{tpu_custom_call.1} parent=5 // pred_fallthru
        _
      %p2354 = scmp.le.s32.totalorder 2, %s14
      // Predicated region
      $region45: #{tpu_custom_call.1} parent=5 // pred_check
        %p2355 = pneg %p2354
      $region46: #{tpu_custom_call.1} parent=5 // pred_check_branch
        %2357 = sbr.rel (%p2355) target = $region48
      $region47: #{tpu_custom_call.1} parent=5 // pred_region
        %s2358 = ssub.s32 %s14, 2
        // Predicated region
        $region49: #{tpu_custom_call.1} parent=47 // pred_check
          %p2359 = pneg %p153
        $region50: #{tpu_custom_call.1} parent=47 // pred_check_branch
          %2361 = sbr.rel (%p2359) target = $region52
        $region51: #{tpu_custom_call.1} parent=47 // pred_region
          %s2362 = sand.u32 %s138, 1
          %s2363 = scalar_lea.sflag [#allocation3], %s2362
          %s2364 = sand.u32 %s138, 1
          %s2365 = smul.addr %s2364, 8
          %s2366 = scalar_lea.vmem [#allocation2], %s2365
          %2367 = dma.done %s2363, 128
        $region52: #{tpu_custom_call.1} parent=47 // pred_fallthru
          _
      $region48: #{tpu_custom_call.1} parent=5 // pred_fallthru
        _
    $region6: #{tpu_custom_call.1} parent=1 // loop_footer
      %s18 = sadd.s32 1, %s14
    $region7: #{tpu_custom_call.1} parent=1 // loop_footer_branch
      %13 = sbr.rel target = $region3
    $region8: #{tpu_custom_call.1} parent=1 // loop_exit
      _
    %2368 = vsyncpa [#allocation3], 1
    %s2369 = scalar_lea.sflag [#allocation3], 1
    %2370 = vsyncpa %s2369, 1

</llo_original>
